<compile_context>
chip_gen: v7x
topology: tpu7x:2x2x1
jax: 0.10.0
libtpu: 0.0.40
codegen_flags: <defaults>
</compile_context>

<pallas_src>
import functools

import jax
import jax.numpy as jnp
from jax.experimental import pallas as pl
from jax.experimental.pallas import tpu as pltpu

IMG_SIZE = (16, 16, 8)            # (D, H, W); original module uses (128, 128, 64)
C1, C2 = 16, 32                   # conv channel counts (no padding)
NO_PAD = 128                      # fc2 output padded to one dense lane group
VMEM_LIMIT = 48 * 1024 * 1024     # > default scoped limit, < v7x's 64 MiB physical


# ---------------------------------------------------------------------------
# Fused Conv3d(k=3, pad=1) + bias + ReLU + MaxPool3d(2,2).
# Grid = (B, Do, ds, kd):
#   Do = pooled output depth, ds in {0,1} = which conv plane of the depth pair,
#   kd in {0,1,2} = depth tap (reduction -> f32 VMEM accumulator).
# Per (kd, kh) the conv over W and Cin is one MXU matmul against a banded
# weight matrix whose columns are ordered (w%2, w//2, cout), so the W pool max
# is a contiguous half-split of the lanes.
# ---------------------------------------------------------------------------
def _conv_pool_kernel(x_ref, w_ref, b_ref, o_ref, acc_ref, pool_ref, *, H):
    # x_ref:    (1, 1, H+2, (W+2)*Cin)  one padded input depth plane (bf16)
    # w_ref:    (9, (W+2)*Cin, W*Cout)  banded weights, index kd*3 + kh (bf16)
    # b_ref:    (1, (W//2)*Cout)        bias row, (w, c) order (f32)
    # o_ref:    (1, 1, H//2, (W//2)*Cout)
    # acc_ref:  (H, W*Cout) f32   conv accumulator (columns in (w%2, w//2, c))
    # pool_ref: (H//2, (W//2)*Cout) f32   holds the ds==0 pooled plane
    ds = pl.program_id(2)
    kd = pl.program_id(3)

    @pl.when(kd == 0)
    def _():
        acc_ref[...] = jnp.zeros_like(acc_ref)

    acc = acc_ref[...]
    for kh in range(3):
        lhs = x_ref[0, 0, kh:kh + H, :]              # (H, (W+2)*Cin), bf16
        acc += jnp.dot(lhs, w_ref[kd * 3 + kh],
                       preferred_element_type=jnp.float32)
    acc_ref[...] = acc

    @pl.when(kd == 2)
    def _():
        half = acc_ref.shape[1] // 2                 # (W//2) * Cout
        y = acc_ref[...]
        y = jnp.maximum(y[:, :half], y[:, half:])    # max over W pairs
        y = y.reshape(H // 2, 2, half)
        y = jnp.maximum(y[:, 0], y[:, 1])            # max over H pairs

        @pl.when(ds == 0)
        def _():
            pool_ref[...] = y

        @pl.when(ds == 1)
        def _():
            # Depth-pair max, then bias + ReLU (commutes with the max because
            # x -> relu(x + b) is monotone and b is constant per channel).
            z = jnp.maximum(pool_ref[...], y) + b_ref[...]
            z = jnp.maximum(z, 0.0)
            o_ref[...] = z.reshape(1, 1, H // 2, half).astype(o_ref.dtype)


def conv3d_relu_pool(xp, w_banded, bias_row, *, H, W, Cin, Cout):
    """xp: (B, D+2, H+2, (W+2)*Cin) halo-padded channels-last-folded input.

    Returns (B, D//2, H//2, (W//2)*Cout) bf16 pooled activations.
    """
    B = xp.shape[0]
    D = xp.shape[1] - 2
    Do, Ho, Wo = D // 2, H // 2, W // 2
    kernel = functools.partial(_conv_pool_kernel, H=H)
    return pl.pallas_call(
        kernel,
        out_shape=jax.ShapeDtypeStruct((B, Do, Ho, Wo * Cout), jnp.bfloat16),
        grid=(B, Do, 2, 3),
        in_specs=[
            pl.BlockSpec((1, 1, H + 2, (W + 2) * Cin),
                         lambda b, do, ds, kd: (b, 2 * do + ds + kd, 0, 0)),
            pl.BlockSpec((9, (W + 2) * Cin, W * Cout),
                         lambda b, do, ds, kd: (0, 0, 0)),      # DMA'd once
            pl.BlockSpec((1, Wo * Cout), lambda b, do, ds, kd: (0, 0)),
        ],
        out_specs=pl.BlockSpec((1, 1, Ho, Wo * Cout),
                               lambda b, do, ds, kd: (b, do, 0, 0)),
        scratch_shapes=[pltpu.VMEM((H, W * Cout), jnp.float32),
                        pltpu.VMEM((Ho, Wo * Cout), jnp.float32)],
        compiler_params=pltpu.CompilerParams(
            dimension_semantics=("parallel", "parallel", "arbitrary", "arbitrary"),
            vmem_limit_bytes=VMEM_LIMIT),
    )(xp, w_banded, bias_row)


# ---------------------------------------------------------------------------
# fc1 + ReLU + fc2 + bias fused into one K-tiled kernel.  The fc1 weight is
# packed as (K/2, 128) (two 64-wide K-halves side by side -> lane dense) and
# streamed in large (tk, 128) blocks; fc2 runs in the last-K-block finalize.
# ---------------------------------------------------------------------------
def _fc_fused_kernel(x_ref, w1_ref, b1_ref, w2_ref, b2_ref, o_ref, acc_ref):
    k = pl.program_id(0)
    nh = w1_ref.shape[1] // 2

    @pl.when(k == 0)
    def _():
        acc_ref[...] = jnp.zeros_like(acc_ref)

    acc_ref[...] += (
        jnp.dot(x_ref[:, 0, :], w1_ref[:, :nh], preferred_element_type=jnp.float32)
        + jnp.dot(x_ref[:, 1, :], w1_ref[:, nh:], preferred_element_type=jnp.float32))

    @pl.when(k == pl.num_programs(0) - 1)
    def _():
        h = jnp.maximum(acc_ref[...] + b1_ref[...], 0.0)          # fc1 bias + ReLU
        out = jnp.dot(h.astype(w2_ref.dtype), w2_ref[...],
                      preferred_element_type=jnp.float32) + b2_ref[...]
        o_ref[...] = out.astype(o_ref.dtype)                      # fc2 + bias


def fc1_fc2_fused(x, w1p, b1, w2, b2):
    """x: (B, K) bf16; w1p: (K//2, 2*Nh) bf16; w2: (Nh, No) bf16."""
    B, K = x.shape
    Kh = K // 2
    Nh = w1p.shape[1] // 2
    No = w2.shape[1]
    if Kh <= 16384:
        tk = Kh
    else:
        tk = next((t for t in (16384, 8192, 4096, 2048, 1024, 512, 256, 128)
                   if Kh % t == 0), Kh)
    xr = x.reshape(B, 2, Kh)                         # free reshape: the two K halves
    return pl.pallas_call(
        _fc_fused_kernel,
        out_shape=jax.ShapeDtypeStruct((B, No), jnp.float32),
        grid=(Kh // tk,),
        in_specs=[
            pl.BlockSpec((B, 2, tk), lambda k: (0, 0, k)),
            pl.BlockSpec((tk, 2 * Nh), lambda k: (k, 0)),
            pl.BlockSpec((1, Nh), lambda k: (0, 0)),
            pl.BlockSpec((Nh, No), lambda k: (0, 0)),
            pl.BlockSpec((1, No), lambda k: (0, 0)),
        ],
        out_specs=pl.BlockSpec((B, No), lambda k: (0, 0)),
        scratch_shapes=[pltpu.VMEM((B, Nh), jnp.float32)],
        compiler_params=pltpu.CompilerParams(
            dimension_semantics=("arbitrary",),
            vmem_limit_bytes=VMEM_LIMIT),
    )(xr, w1p, b1, w2, b2)


# ---------------------------------------------------------------------------
# Offline weight repacking.
# ---------------------------------------------------------------------------
def build_banded_weights(w, W):
    """w: (3, 3, 3, Cin, Cout) conv taps (kd, kh, kw, ci, co).

    Returns (9, (W+2)*Cin, W*Cout) bf16 banded matrices M[kd*3+kh] such that
    x_pad_plane[h+kh].reshape(-1) @ M gives the (kd, kh)-partial conv sums for
    every output w.  Output columns are permuted to (w%2, w//2, co) so the
    2-wide W max-pool becomes a contiguous lane half-split.
    """
    _, _, _, Cin, Cout = w.shape
    Wo = W // 2
    eye = jnp.eye(W + 2, dtype=jnp.float32)
    mats = []
    for kd in range(3):
        for kh in range(3):
            band = sum(
                eye[:, kw:kw + W][:, None, :, None]
                * w[kd, kh, kw][None, :, None, :]
                for kw in range(3))                          # (W+2, Cin, W, Cout)
            band = band.reshape(W + 2, Cin, Wo, 2, Cout)
            band = jnp.transpose(band, (0, 1, 3, 2, 4))      # (W+2, Cin, 2, Wo, Cout)
            mats.append(band.reshape((W + 2) * Cin, 2 * Wo * Cout))
    return jnp.stack(mats).astype(jnp.bfloat16)


def init_params(key):
    """Raw parameters.  Conv weights use (kd, kh, kw, Cin, Cout) layout; real
    torch Conv3d weights (Cout, Cin, kd, kh, kw) would need transpose(2,3,4,1,0).
    fc1 rows follow PyTorch's x.view(B, -1) on NCDHW: (c, d, h, w) order."""
    D, H, W = IMG_SIZE
    fc1_in = 32 * (D // 4) * (H // 4) * (W // 4)     # same as _initialize_fc1
    ks = jax.random.split(key, 6)
    return {
        "conv1_w": 0.10 * jax.random.normal(ks[0], (3, 3, 3, 1, C1), jnp.float32),
        "conv1_b": jnp.zeros((C1,), jnp.float32),
        "conv2_w": 0.05 * jax.random.normal(ks[1], (3, 3, 3, C1, C2), jnp.float32),
        "conv2_b": jnp.zeros((C2,), jnp.float32),
        "fc1_w": 0.05 * jax.random.normal(ks[2], (fc1_in, 64), jnp.float32),
        "fc1_b": 0.01 * jax.random.normal(ks[3], (64,), jnp.float32),
        "fc2_w": 0.05 * jax.random.normal(ks[4], (64, 2), jnp.float32),
        "fc2_b": 0.01 * jax.random.normal(ks[5], (2,), jnp.float32),
    }


def prepare_params(p):
    D, H, W = IMG_SIZE
    D1, H1, W1 = D // 2, H // 2, W // 2              # conv2 input spatial size
    D2, H2, W2 = D // 4, H // 4, W // 4              # fc input spatial size

    # fc1: permute rows from the NCDHW flatten order to the channels-last
    # flatten order, then pack the two K halves side by side (lane dense).
    w1 = p["fc1_w"].reshape(C2, D2, H2, W2, 64)
    w1 = jnp.transpose(w1, (1, 2, 3, 0, 4)).reshape(D2 * H2 * W2 * C2, 64)
    K = w1.shape[0]
    w1p = jnp.concatenate([w1[:K // 2], w1[K // 2:]], axis=1).astype(jnp.bfloat16)

    return {
        "c1w": build_banded_weights(p["conv1_w"], W),
        "c1b": jnp.tile(p["conv1_b"], W1).reshape(1, W1 * C1).astype(jnp.float32),
        "c2w": build_banded_weights(p["conv2_w"], W1),
        "c2b": jnp.tile(p["conv2_b"], W2).reshape(1, W2 * C2).astype(jnp.float32),
        "f1w": w1p,
        "f1b": p["fc1_b"].reshape(1, 64).astype(jnp.float32),
        "f2w": jnp.pad(p["fc2_w"], ((0, 0), (0, NO_PAD - 2))).astype(jnp.bfloat16),
        "f2b": jnp.pad(p["fc2_b"], (0, NO_PAD - 2)).reshape(1, NO_PAD).astype(jnp.float32),
    }


# ---------------------------------------------------------------------------
# Forward pass (same semantics as LiverCNN.forward).
# ---------------------------------------------------------------------------
@jax.jit
def liver_cnn_forward(kp, x_ncdhw):
    B = x_ncdhw.shape[0]
    D, H, W = x_ncdhw.shape[2:]
    D1, H1, W1 = D // 2, H // 2, W // 2

    x = x_ncdhw[:, 0].astype(jnp.bfloat16)                    # (B, D, H, W); Cin=1
    xp = jnp.pad(x, ((0, 0), (1, 1), (1, 1), (1, 1)))         # halo (torch padding=1)
    y1 = conv3d_relu_pool(xp, kp["c1w"], kp["c1b"],
                          H=H, W=W, Cin=1, Cout=C1)           # (B, D/2, H/2, (W/2)*16)

    y1p = jnp.pad(y1, ((0, 0), (1, 1), (1, 1), (C1, C1)))     # halo; last dim = (W1+2)*16
    y2 = conv3d_relu_pool(y1p, kp["c2w"], kp["c2b"],
                          H=H1, W=W1, Cin=C1, Cout=C2)        # (B, D/4, H/4, (W/4)*32)

    out = fc1_fc2_fused(y2.reshape(B, -1),
                        kp["f1w"], kp["f1b"], kp["f2w"], kp["f2b"])
    return out[:, :2]                                         # drop fc2 lane padding


# ---------------------------------------------------------------------------
# Pure-JAX f32 reference (for a tolerance check of the bf16 kernel pipeline).
# ---------------------------------------------------------------------------
def reference_forward(p, x_ncdhw):
    x = jnp.transpose(x_ncdhw, (0, 2, 3, 4, 1))               # NDHWC

    def conv(x, w, b):
        y = jax.lax.conv_general_dilated(
            x, w, window_strides=(1, 1, 1), padding="SAME",
            dimension_numbers=("NDHWC", "DHWIO", "NDHWC"))
        return jax.nn.relu(y + b)

    def pool(x):
        return jax.lax.reduce_window(x, -jnp.inf, jax.lax.max,
                                     (1, 2, 2, 2, 1), (1, 2, 2, 2, 1), "VALID")

    x = pool(conv(x, p["conv1_w"], p["conv1_b"]))
    x = pool(conv(x, p["conv2_w"], p["conv2_b"]))
    B = x.shape[0]
    x = jnp.transpose(x, (0, 4, 1, 2, 3)).reshape(B, -1)      # NCDHW flatten (torch)
    h = jax.nn.relu(x @ p["fc1_w"] + p["fc1_b"])
    return h @ p["fc2_w"] + p["fc2_b"]


if __name__ == "__main__":
    key = jax.random.PRNGKey(0)
    pkey, xkey = jax.random.split(key)
    raw = init_params(pkey)
    params = prepare_params(raw)

    D, H, W = IMG_SIZE
    x = jax.random.normal(xkey, (2, 1, D, H, W), jnp.float32)

    out = liver_cnn_forward(params, x)
    out = jax.block_until_ready(out)

    assert out.shape == (2, 2), out.shape
    assert bool(jnp.all(jnp.isfinite(out)))

    ref = reference_forward(raw, x)
    max_err = float(jnp.max(jnp.abs(out - ref)))
    assert max_err < 0.15, f"max abs err vs f32 reference too large: {max_err}"

    print("KERNEL_OK")
</pallas_src>

<mosaic_0001>
module attributes {stable_mosaic.version = 11 : i64} {
  func.func @_conv_pool_kernel(%arg0: i32, %arg1: i32, %arg2: i32, %arg3: i32, %arg4: memref<1x1x18x10xbf16, #tpu.memory_space<vmem>>, %arg5: memref<9x10x128xbf16, #tpu.memory_space<vmem>>, %arg6: memref<1x64xf32, #tpu.memory_space<vmem>>, %arg7: memref<1x1x8x64xbf16, #tpu.memory_space<vmem>>, %arg8: memref<16x128xf32, #tpu.memory_space<vmem>>, %arg9: memref<8x64xf32, #tpu.memory_space<vmem>>) attributes {dimension_semantics = [#tpu.dimension_semantics<parallel>, #tpu.dimension_semantics<parallel>, #tpu.dimension_semantics<arbitrary>, #tpu.dimension_semantics<arbitrary>], iteration_bounds = array<i64: 2, 8, 2, 3>, scalar_prefetch = 0 : i64, scratch_operands = 2 : i64, tpu.core_type = #tpu.core_type<tc>, window_params = [{transform_indices = @transform_0, window_bounds = array<i64: 1, 1, 18, 10>}, {pipeline_mode = #tpu.pipeline_mode<synchronous>, transform_indices = @transform_1, window_bounds = array<i64: 9, 10, 128>}, {pipeline_mode = #tpu.pipeline_mode<synchronous>, transform_indices = @transform_2, window_bounds = array<i64: 1, 64>}, {transform_indices = @transform_3, window_bounds = array<i64: 1, 1, 8, 64>}]} {
    %c0_i32 = arith.constant 0 : i32
    %0 = arith.cmpi eq, %arg3, %c0_i32 : i32
    %1 = arith.extui %0 : i1 to i32
    %c0_i32_0 = arith.constant 0 : i32
    %2 = arith.cmpi ne, %1, %c0_i32_0 : i32
    scf.if %2 {
      %cst_27 = arith.constant 0.000000e+00 : f32
      %35 = vector.broadcast %cst_27 : f32 to vector<16x128xf32>
      %c0_28 = arith.constant 0 : index
      %c0_29 = arith.constant 0 : index
      %36 = vector.load %arg8[%c0_28, %c0_29] : memref<16x128xf32, #tpu.memory_space<vmem>>, vector<16x128xf32>
      tpu.vector_store %arg8[%c0_28, %c0_29], %35 {strides = array<i32>} : memref<16x128xf32, #tpu.memory_space<vmem>>, vector<16x128xf32>,
    } else {
    }
    %c0 = arith.constant 0 : index
    %c0_1 = arith.constant 0 : index
    %3 = vector.load %arg8[%c0, %c0_1] : memref<16x128xf32, #tpu.memory_space<vmem>>, vector<16x128xf32>
    %c0_2 = arith.constant 0 : index
    %c0_3 = arith.constant 0 : index
    %c0_4 = arith.constant 0 : index
    %c0_5 = arith.constant 0 : index
    %4 = vector.load %arg4[%c0_2, %c0_3, %c0_4, %c0_5] : memref<1x1x18x10xbf16, #tpu.memory_space<vmem>>, vector<1x1x16x10xbf16>
    %5 = vector.shape_cast %4 : vector<1x1x16x10xbf16> to vector<16x10xbf16>
    %c3_i32 = arith.constant 3 : i32
    %6 = arith.muli %arg3, %c3_i32 : i32
    %c0_i32_6 = arith.constant 0 : i32
    %7 = arith.addi %6, %c0_i32_6 : i32
    %8 = arith.index_cast %7 : i32 to index
    %c0_7 = arith.constant 0 : index
    %c0_8 = arith.constant 0 : index
    %9 = vector.load %arg5[%8, %c0_7, %c0_8] : memref<9x10x128xbf16, #tpu.memory_space<vmem>>, vector<1x10x128xbf16>
    %10 = vector.shape_cast %9 : vector<1x10x128xbf16> to vector<10x128xbf16>
    %cst = arith.constant dense<0.000000e+00> : vector<16x128xf32>
    %11 = tpu.matmul %5, %10, %cst {dimension_numbers = #tpu.dot_dimension_numbers<[1], [0], [0], [1], [0, 0, 1, 1], [], []>} : vector<16x10xbf16>, vector<10x128xbf16>, vector<16x128xf32> -> vector<16x128xf32>
    %12 = arith.addf %3, %11 : vector<16x128xf32>
    %c0_9 = arith.constant 0 : index
    %c0_10 = arith.constant 0 : index
    %c1 = arith.constant 1 : index
    %c0_11 = arith.constant 0 : index
    %13 = vector.load %arg4[%c0_9, %c0_10, %c1, %c0_11] : memref<1x1x18x10xbf16, #tpu.memory_space<vmem>>, vector<1x1x16x10xbf16>
    %14 = vector.shape_cast %13 : vector<1x1x16x10xbf16> to vector<16x10xbf16>
    %c3_i32_12 = arith.constant 3 : i32
    %15 = arith.muli %arg3, %c3_i32_12 : i32
    %c1_i32 = arith.constant 1 : i32
    %16 = arith.addi %15, %c1_i32 : i32
    %17 = arith.index_cast %16 : i32 to index
    %c0_13 = arith.constant 0 : index
    %c0_14 = arith.constant 0 : index
    %18 = vector.load %arg5[%17, %c0_13, %c0_14] : memref<9x10x128xbf16, #tpu.memory_space<vmem>>, vector<1x10x128xbf16>
    %19 = vector.shape_cast %18 : vector<1x10x128xbf16> to vector<10x128xbf16>
    %cst_15 = arith.constant dense<0.000000e+00> : vector<16x128xf32>
    %20 = tpu.matmul %14, %19, %cst_15 {dimension_numbers = #tpu.dot_dimension_numbers<[1], [0], [0], [1], [0, 0, 1, 1], [], []>} : vector<16x10xbf16>, vector<10x128xbf16>, vector<16x128xf32> -> vector<16x128xf32>
    %21 = arith.addf %12, %20 : vector<16x128xf32>
    %c0_16 = arith.constant 0 : index
    %c0_17 = arith.constant 0 : index
    %c2 = arith.constant 2 : index
    %c0_18 = arith.constant 0 : index
    %22 = vector.load %arg4[%c0_16, %c0_17, %c2, %c0_18] : memref<1x1x18x10xbf16, #tpu.memory_space<vmem>>, vector<1x1x16x10xbf16>
    %23 = vector.shape_cast %22 : vector<1x1x16x10xbf16> to vector<16x10xbf16>
    %c3_i32_19 = arith.constant 3 : i32
    %24 = arith.muli %arg3, %c3_i32_19 : i32
    %c2_i32 = arith.constant 2 : i32
    %25 = arith.addi %24, %c2_i32 : i32
    %26 = arith.index_cast %25 : i32 to index
    %c0_20 = arith.constant 0 : index
    %c0_21 = arith.constant 0 : index
    %27 = vector.load %arg5[%26, %c0_20, %c0_21] : memref<9x10x128xbf16, #tpu.memory_space<vmem>>, vector<1x10x128xbf16>
    %28 = vector.shape_cast %27 : vector<1x10x128xbf16> to vector<10x128xbf16>
    %cst_22 = arith.constant dense<0.000000e+00> : vector<16x128xf32>
    %29 = tpu.matmul %23, %28, %cst_22 {dimension_numbers = #tpu.dot_dimension_numbers<[1], [0], [0], [1], [0, 0, 1, 1], [], []>} : vector<16x10xbf16>, vector<10x128xbf16>, vector<16x128xf32> -> vector<16x128xf32>
    %30 = arith.addf %21, %29 : vector<16x128xf32>
    %c0_23 = arith.constant 0 : index
    %c0_24 = arith.constant 0 : index
    %31 = vector.load %arg8[%c0_23, %c0_24] : memref<16x128xf32, #tpu.memory_space<vmem>>, vector<16x128xf32>
    tpu.vector_store %arg8[%c0_23, %c0_24], %30 {strides = array<i32>} : memref<16x128xf32, #tpu.memory_space<vmem>>, vector<16x128xf32>,
    %c2_i32_25 = arith.constant 2 : i32
    %32 = arith.cmpi eq, %arg3, %c2_i32_25 : i32
    %33 = arith.extui %32 : i1 to i32
    %c0_i32_26 = arith.constant 0 : i32
    %34 = arith.cmpi ne, %33, %c0_i32_26 : i32
    scf.if %34 {
      %c0_27 = arith.constant 0 : index
      %c0_28 = arith.constant 0 : index
      %35 = vector.load %arg8[%c0_27, %c0_28] : memref<16x128xf32, #tpu.memory_space<vmem>>, vector<16x128xf32>
      %36 = vector.extract_strided_slice %35 {offsets = [0, 0], sizes = [16, 64], strides = [1, 1]} : vector<16x128xf32> to vector<16x64xf32>
      %37 = vector.extract_strided_slice %35 {offsets = [0, 64], sizes = [16, 64], strides = [1, 1]} : vector<16x128xf32> to vector<16x64xf32>
      %38 = arith.maximumf %36, %37 : vector<16x64xf32>
      %39 = vector.shape_cast %38 : vector<16x64xf32> to vector<8x2x64xf32>
      %40 = vector.extract_strided_slice %39 {offsets = [0, 0, 0], sizes = [8, 1, 64], strides = [1, 1, 1]} : vector<8x2x64xf32> to vector<8x1x64xf32>
      %41 = vector.shape_cast %40 : vector<8x1x64xf32> to vector<8x64xf32>
      %42 = vector.extract_strided_slice %39 {offsets = [0, 1, 0], sizes = [8, 1, 64], strides = [1, 1, 1]} : vector<8x2x64xf32> to vector<8x1x64xf32>
      %43 = vector.shape_cast %42 : vector<8x1x64xf32> to vector<8x64xf32>
      %44 = arith.maximumf %41, %43 : vector<8x64xf32>
      %c0_i32_29 = arith.constant 0 : i32
      %45 = arith.cmpi eq, %arg2, %c0_i32_29 : i32
      %46 = arith.extui %45 : i1 to i32
      %c0_i32_30 = arith.constant 0 : i32
      %47 = arith.cmpi ne, %46, %c0_i32_30 : i32
      scf.if %47 {
        %c0_33 = arith.constant 0 : index
        %c0_34 = arith.constant 0 : index
        %51 = vector.load %arg9[%c0_33, %c0_34] : memref<8x64xf32, #tpu.memory_space<vmem>>, vector<8x64xf32>
        tpu.vector_store %arg9[%c0_33, %c0_34], %44 {strides = array<i32>} : memref<8x64xf32, #tpu.memory_space<vmem>>, vector<8x64xf32>,
      } else {
      }
      %c1_i32_31 = arith.constant 1 : i32
      %48 = arith.cmpi eq, %arg2, %c1_i32_31 : i32
      %49 = arith.extui %48 : i1 to i32
      %c0_i32_32 = arith.constant 0 : i32
      %50 = arith.cmpi ne, %49, %c0_i32_32 : i32
      scf.if %50 {
        %c0_33 = arith.constant 0 : index
        %c0_34 = arith.constant 0 : index
        %51 = vector.load %arg9[%c0_33, %c0_34] : memref<8x64xf32, #tpu.memory_space<vmem>>, vector<8x64xf32>
        %52 = arith.maximumf %51, %44 : vector<8x64xf32>
        %c0_35 = arith.constant 0 : index
        %c0_36 = arith.constant 0 : index
        %53 = vector.load %arg6[%c0_35, %c0_36] : memref<1x64xf32, #tpu.memory_space<vmem>>, vector<1x64xf32>
        %54 = vector.broadcast %53 : vector<1x64xf32> to vector<8x64xf32>
        %55 = arith.addf %52, %54 : vector<8x64xf32>
        %cst_37 = arith.constant 0.000000e+00 : f32
        %56 = vector.broadcast %cst_37 : f32 to vector<8x64xf32>
        %57 = arith.maximumf %55, %56 : vector<8x64xf32>
        %58 = vector.shape_cast %57 : vector<8x64xf32> to vector<1x1x8x64xf32>
        %59 = arith.truncf %58 : vector<1x1x8x64xf32> to vector<1x1x8x64xbf16>
        %c0_38 = arith.constant 0 : index
        %c0_39 = arith.constant 0 : index
        %c0_40 = arith.constant 0 : index
        %c0_41 = arith.constant 0 : index
        %60 = vector.load %arg7[%c0_38, %c0_39, %c0_40, %c0_41] : memref<1x1x8x64xbf16, #tpu.memory_space<vmem>>, vector<1x1x8x64xbf16>
        tpu.vector_store %arg7[%c0_38, %c0_39, %c0_40, %c0_41], %59 {strides = array<i32>} : memref<1x1x8x64xbf16, #tpu.memory_space<vmem>>, vector<1x1x8x64xbf16>,
      } else {
      }
    } else {
    }
    return
  }
  func.func @transform_0(%arg0: i32, %arg1: i32, %arg2: i32, %arg3: i32) -> (i32, i32, i32, i32) {
    %c2_i32 = arith.constant 2 : i32
    %0 = arith.muli %c2_i32, %arg1 : i32
    %1 = arith.addi %0, %arg2 : i32
    %2 = arith.addi %1, %arg3 : i32
    %c0_i32 = arith.constant 0 : i32
    %c0_i32_0 = arith.constant 0 : i32
    %c0_i32_1 = arith.constant 0 : i32
    return %arg0, %2, %c0_i32, %c0_i32_0 : i32, i32, i32, i32
  }
  func.func @transform_1(%arg0: i32, %arg1: i32, %arg2: i32, %arg3: i32) -> (i32, i32, i32) {
    %c0_i32 = arith.constant 0 : i32
    %c0_i32_0 = arith.constant 0 : i32
    %c0_i32_1 = arith.constant 0 : i32
    %c0_i32_2 = arith.constant 0 : i32
    return %c0_i32, %c0_i32_0, %c0_i32_1 : i32, i32, i32
  }
  func.func @transform_2(%arg0: i32, %arg1: i32, %arg2: i32, %arg3: i32) -> (i32, i32) {
    %c0_i32 = arith.constant 0 : i32
    %c0_i32_0 = arith.constant 0 : i32
    %c0_i32_1 = arith.constant 0 : i32
    return %c0_i32, %c0_i32_0 : i32, i32
  }
  func.func @transform_3(%arg0: i32, %arg1: i32, %arg2: i32, %arg3: i32) -> (i32, i32, i32, i32) {
    %c0_i32 = arith.constant 0 : i32
    %c0_i32_0 = arith.constant 0 : i32
    %c0_i32_1 = arith.constant 0 : i32
    return %arg0, %arg1, %c0_i32, %c0_i32_0 : i32, i32, i32, i32
  }
}

module attributes {stable_mosaic.version = 11 : i64} {
  func.func @_conv_pool_kernel(%arg0: i32, %arg1: i32, %arg2: i32, %arg3: i32, %arg4: memref<1x1x10x96xbf16, #tpu.memory_space<vmem>>, %arg5: memref<9x96x128xbf16, #tpu.memory_space<vmem>>, %arg6: memref<1x64xf32, #tpu.memory_space<vmem>>, %arg7: memref<1x1x4x64xbf16, #tpu.memory_space<vmem>>, %arg8: memref<8x128xf32, #tpu.memory_space<vmem>>, %arg9: memref<4x64xf32, #tpu.memory_space<vmem>>) attributes {dimension_semantics = [#tpu.dimension_semantics<parallel>, #tpu.dimension_semantics<parallel>, #tpu.dimension_semantics<arbitrary>, #tpu.dimension_semantics<arbitrary>], iteration_bounds = array<i64: 2, 4, 2, 3>, scalar_prefetch = 0 : i64, scratch_operands = 2 : i64, tpu.core_type = #tpu.core_type<tc>, window_params = [{transform_indices = @transform_0, window_bounds = array<i64: 1, 1, 10, 96>}, {pipeline_mode = #tpu.pipeline_mode<synchronous>, transform_indices = @transform_1, window_bounds = array<i64: 9, 96, 128>}, {pipeline_mode = #tpu.pipeline_mode<synchronous>, transform_indices = @transform_2, window_bounds = array<i64: 1, 64>}, {transform_indices = @transform_3, window_bounds = array<i64: 1, 1, 4, 64>}]} {
    %c0_i32 = arith.constant 0 : i32
    %0 = arith.cmpi eq, %arg3, %c0_i32 : i32
    %1 = arith.extui %0 : i1 to i32
    %c0_i32_0 = arith.constant 0 : i32
    %2 = arith.cmpi ne, %1, %c0_i32_0 : i32
    scf.if %2 {
      %cst_27 = arith.constant 0.000000e+00 : f32
      %35 = vector.broadcast %cst_27 : f32 to vector<8x128xf32>
      %c0_28 = arith.constant 0 : index
      %c0_29 = arith.constant 0 : index
      %36 = vector.load %arg8[%c0_28, %c0_29] : memref<8x128xf32, #tpu.memory_space<vmem>>, vector<8x128xf32>
      tpu.vector_store %arg8[%c0_28, %c0_29], %35 {strides = array<i32>} : memref<8x128xf32, #tpu.memory_space<vmem>>, vector<8x128xf32>,
    } else {
    }
    %c0 = arith.constant 0 : index
    %c0_1 = arith.constant 0 : index
    %3 = vector.load %arg8[%c0, %c0_1] : memref<8x128xf32, #tpu.memory_space<vmem>>, vector<8x128xf32>
    %c0_2 = arith.constant 0 : index
    %c0_3 = arith.constant 0 : index
    %c0_4 = arith.constant 0 : index
    %c0_5 = arith.constant 0 : index
    %4 = vector.load %arg4[%c0_2, %c0_3, %c0_4, %c0_5] : memref<1x1x10x96xbf16, #tpu.memory_space<vmem>>, vector<1x1x8x96xbf16>
    %5 = vector.shape_cast %4 : vector<1x1x8x96xbf16> to vector<8x96xbf16>
    %c3_i32 = arith.constant 3 : i32
    %6 = arith.muli %arg3, %c3_i32 : i32
    %c0_i32_6 = arith.constant 0 : i32
    %7 = arith.addi %6, %c0_i32_6 : i32
    %8 = arith.index_cast %7 : i32 to index
    %c0_7 = arith.constant 0 : index
    %c0_8 = arith.constant 0 : index
    %9 = vector.load %arg5[%8, %c0_7, %c0_8] : memref<9x96x128xbf16, #tpu.memory_space<vmem>>, vector<1x96x128xbf16>
    %10 = vector.shape_cast %9 : vector<1x96x128xbf16> to vector<96x128xbf16>
    %cst = arith.constant dense<0.000000e+00> : vector<8x128xf32>
    %11 = tpu.matmul %5, %10, %cst {dimension_numbers = #tpu.dot_dimension_numbers<[1], [0], [0], [1], [0, 0, 1, 1], [], []>} : vector<8x96xbf16>, vector<96x128xbf16>, vector<8x128xf32> -> vector<8x128xf32>
    %12 = arith.addf %3, %11 : vector<8x128xf32>
    %c0_9 = arith.constant 0 : index
    %c0_10 = arith.constant 0 : index
    %c1 = arith.constant 1 : index
    %c0_11 = arith.constant 0 : index
    %13 = vector.load %arg4[%c0_9, %c0_10, %c1, %c0_11] : memref<1x1x10x96xbf16, #tpu.memory_space<vmem>>, vector<1x1x8x96xbf16>
    %14 = vector.shape_cast %13 : vector<1x1x8x96xbf16> to vector<8x96xbf16>
    %c3_i32_12 = arith.constant 3 : i32
    %15 = arith.muli %arg3, %c3_i32_12 : i32
    %c1_i32 = arith.constant 1 : i32
    %16 = arith.addi %15, %c1_i32 : i32
    %17 = arith.index_cast %16 : i32 to index
    %c0_13 = arith.constant 0 : index
    %c0_14 = arith.constant 0 : index
    %18 = vector.load %arg5[%17, %c0_13, %c0_14] : memref<9x96x128xbf16, #tpu.memory_space<vmem>>, vector<1x96x128xbf16>
    %19 = vector.shape_cast %18 : vector<1x96x128xbf16> to vector<96x128xbf16>
    %cst_15 = arith.constant dense<0.000000e+00> : vector<8x128xf32>
    %20 = tpu.matmul %14, %19, %cst_15 {dimension_numbers = #tpu.dot_dimension_numbers<[1], [0], [0], [1], [0, 0, 1, 1], [], []>} : vector<8x96xbf16>, vector<96x128xbf16>, vector<8x128xf32> -> vector<8x128xf32>
    %21 = arith.addf %12, %20 : vector<8x128xf32>
    %c0_16 = arith.constant 0 : index
    %c0_17 = arith.constant 0 : index
    %c2 = arith.constant 2 : index
    %c0_18 = arith.constant 0 : index
    %22 = vector.load %arg4[%c0_16, %c0_17, %c2, %c0_18] : memref<1x1x10x96xbf16, #tpu.memory_space<vmem>>, vector<1x1x8x96xbf16>
    %23 = vector.shape_cast %22 : vector<1x1x8x96xbf16> to vector<8x96xbf16>
    %c3_i32_19 = arith.constant 3 : i32
    %24 = arith.muli %arg3, %c3_i32_19 : i32
    %c2_i32 = arith.constant 2 : i32
    %25 = arith.addi %24, %c2_i32 : i32
    %26 = arith.index_cast %25 : i32 to index
    %c0_20 = arith.constant 0 : index
    %c0_21 = arith.constant 0 : index
    %27 = vector.load %arg5[%26, %c0_20, %c0_21] : memref<9x96x128xbf16, #tpu.memory_space<vmem>>, vector<1x96x128xbf16>
    %28 = vector.shape_cast %27 : vector<1x96x128xbf16> to vector<96x128xbf16>
    %cst_22 = arith.constant dense<0.000000e+00> : vector<8x128xf32>
    %29 = tpu.matmul %23, %28, %cst_22 {dimension_numbers = #tpu.dot_dimension_numbers<[1], [0], [0], [1], [0, 0, 1, 1], [], []>} : vector<8x96xbf16>, vector<96x128xbf16>, vector<8x128xf32> -> vector<8x128xf32>
    %30 = arith.addf %21, %29 : vector<8x128xf32>
    %c0_23 = arith.constant 0 : index
    %c0_24 = arith.constant 0 : index
    %31 = vector.load %arg8[%c0_23, %c0_24] : memref<8x128xf32, #tpu.memory_space<vmem>>, vector<8x128xf32>
    tpu.vector_store %arg8[%c0_23, %c0_24], %30 {strides = array<i32>} : memref<8x128xf32, #tpu.memory_space<vmem>>, vector<8x128xf32>,
    %c2_i32_25 = arith.constant 2 : i32
    %32 = arith.cmpi eq, %arg3, %c2_i32_25 : i32
    %33 = arith.extui %32 : i1 to i32
    %c0_i32_26 = arith.constant 0 : i32
    %34 = arith.cmpi ne, %33, %c0_i32_26 : i32
    scf.if %34 {
      %c0_27 = arith.constant 0 : index
      %c0_28 = arith.constant 0 : index
      %35 = vector.load %arg8[%c0_27, %c0_28] : memref<8x128xf32, #tpu.memory_space<vmem>>, vector<8x128xf32>
      %36 = vector.extract_strided_slice %35 {offsets = [0, 0], sizes = [8, 64], strides = [1, 1]} : vector<8x128xf32> to vector<8x64xf32>
      %37 = vector.extract_strided_slice %35 {offsets = [0, 64], sizes = [8, 64], strides = [1, 1]} : vector<8x128xf32> to vector<8x64xf32>
      %38 = arith.maximumf %36, %37 : vector<8x64xf32>
      %39 = vector.shape_cast %38 : vector<8x64xf32> to vector<4x2x64xf32>
      %40 = vector.extract_strided_slice %39 {offsets = [0, 0, 0], sizes = [4, 1, 64], strides = [1, 1, 1]} : vector<4x2x64xf32> to vector<4x1x64xf32>
      %41 = vector.shape_cast %40 : vector<4x1x64xf32> to vector<4x64xf32>
      %42 = vector.extract_strided_slice %39 {offsets = [0, 1, 0], sizes = [4, 1, 64], strides = [1, 1, 1]} : vector<4x2x64xf32> to vector<4x1x64xf32>
      %43 = vector.shape_cast %42 : vector<4x1x64xf32> to vector<4x64xf32>
      %44 = arith.maximumf %41, %43 : vector<4x64xf32>
      %c0_i32_29 = arith.constant 0 : i32
      %45 = arith.cmpi eq, %arg2, %c0_i32_29 : i32
      %46 = arith.extui %45 : i1 to i32
      %c0_i32_30 = arith.constant 0 : i32
      %47 = arith.cmpi ne, %46, %c0_i32_30 : i32
      scf.if %47 {
        %c0_33 = arith.constant 0 : index
        %c0_34 = arith.constant 0 : index
        %51 = vector.load %arg9[%c0_33, %c0_34] : memref<4x64xf32, #tpu.memory_space<vmem>>, vector<4x64xf32>
        tpu.vector_store %arg9[%c0_33, %c0_34], %44 {strides = array<i32>} : memref<4x64xf32, #tpu.memory_space<vmem>>, vector<4x64xf32>,
      } else {
      }
      %c1_i32_31 = arith.constant 1 : i32
      %48 = arith.cmpi eq, %arg2, %c1_i32_31 : i32
      %49 = arith.extui %48 : i1 to i32
      %c0_i32_32 = arith.constant 0 : i32
      %50 = arith.cmpi ne, %49, %c0_i32_32 : i32
      scf.if %50 {
        %c0_33 = arith.constant 0 : index
        %c0_34 = arith.constant 0 : index
        %51 = vector.load %arg9[%c0_33, %c0_34] : memref<4x64xf32, #tpu.memory_space<vmem>>, vector<4x64xf32>
        %52 = arith.maximumf %51, %44 : vector<4x64xf32>
        %c0_35 = arith.constant 0 : index
        %c0_36 = arith.constant 0 : index
        %53 = vector.load %arg6[%c0_35, %c0_36] : memref<1x64xf32, #tpu.memory_space<vmem>>, vector<1x64xf32>
        %54 = vector.broadcast %53 : vector<1x64xf32> to vector<4x64xf32>
        %55 = arith.addf %52, %54 : vector<4x64xf32>
        %cst_37 = arith.constant 0.000000e+00 : f32
        %56 = vector.broadcast %cst_37 : f32 to vector<4x64xf32>
        %57 = arith.maximumf %55, %56 : vector<4x64xf32>
        %58 = vector.shape_cast %57 : vector<4x64xf32> to vector<1x1x4x64xf32>
        %59 = arith.truncf %58 : vector<1x1x4x64xf32> to vector<1x1x4x64xbf16>
        %c0_38 = arith.constant 0 : index
        %c0_39 = arith.constant 0 : index
        %c0_40 = arith.constant 0 : index
        %c0_41 = arith.constant 0 : index
        %60 = vector.load %arg7[%c0_38, %c0_39, %c0_40, %c0_41] : memref<1x1x4x64xbf16, #tpu.memory_space<vmem>>, vector<1x1x4x64xbf16>
        tpu.vector_store %arg7[%c0_38, %c0_39, %c0_40, %c0_41], %59 {strides = array<i32>} : memref<1x1x4x64xbf16, #tpu.memory_space<vmem>>, vector<1x1x4x64xbf16>,
      } else {
      }
    } else {
    }
    return
  }
  func.func @transform_0(%arg0: i32, %arg1: i32, %arg2: i32, %arg3: i32) -> (i32, i32, i32, i32) {
    %c2_i32 = arith.constant 2 : i32
    %0 = arith.muli %c2_i32, %arg1 : i32
    %1 = arith.addi %0, %arg2 : i32
    %2 = arith.addi %1, %arg3 : i32
    %c0_i32 = arith.constant 0 : i32
    %c0_i32_0 = arith.constant 0 : i32
    %c0_i32_1 = arith.constant 0 : i32
    return %arg0, %2, %c0_i32, %c0_i32_0 : i32, i32, i32, i32
  }
  func.func @transform_1(%arg0: i32, %arg1: i32, %arg2: i32, %arg3: i32) -> (i32, i32, i32) {
    %c0_i32 = arith.constant 0 : i32
    %c0_i32_0 = arith.constant 0 : i32
    %c0_i32_1 = arith.constant 0 : i32
    %c0_i32_2 = arith.constant 0 : i32
    return %c0_i32, %c0_i32_0, %c0_i32_1 : i32, i32, i32
  }
  func.func @transform_2(%arg0: i32, %arg1: i32, %arg2: i32, %arg3: i32) -> (i32, i32) {
    %c0_i32 = arith.constant 0 : i32
    %c0_i32_0 = arith.constant 0 : i32
    %c0_i32_1 = arith.constant 0 : i32
    return %c0_i32, %c0_i32_0 : i32, i32
  }
  func.func @transform_3(%arg0: i32, %arg1: i32, %arg2: i32, %arg3: i32) -> (i32, i32, i32, i32) {
    %c0_i32 = arith.constant 0 : i32
    %c0_i32_0 = arith.constant 0 : i32
    %c0_i32_1 = arith.constant 0 : i32
    return %arg0, %arg1, %c0_i32, %c0_i32_0 : i32, i32, i32, i32
  }
}

module attributes {stable_mosaic.version = 11 : i64} {
  func.func @_fc_fused_kernel(%arg0: i32, %arg1: memref<2x2x512xbf16, #tpu.memory_space<vmem>>, %arg2: memref<512x128xbf16, #tpu.memory_space<vmem>>, %arg3: memref<1x64xf32, #tpu.memory_space<vmem>>, %arg4: memref<64x128xbf16, #tpu.memory_space<vmem>>, %arg5: memref<1x128xf32, #tpu.memory_space<vmem>>, %arg6: memref<2x128xf32, #tpu.memory_space<vmem>>, %arg7: memref<2x64xf32, #tpu.memory_space<vmem>>) attributes {dimension_semantics = [#tpu.dimension_semantics<arbitrary>], iteration_bounds = array<i64: 1>, scalar_prefetch = 0 : i64, scratch_operands = 1 : i64, tpu.core_type = #tpu.core_type<tc>, window_params = [{transform_indices = @transform_0, window_bounds = array<i64: 2, 2, 512>}, {transform_indices = @transform_1, window_bounds = array<i64: 512, 128>}, {pipeline_mode = #tpu.pipeline_mode<synchronous>, transform_indices = @transform_2, window_bounds = array<i64: 1, 64>}, {pipeline_mode = #tpu.pipeline_mode<synchronous>, transform_indices = @transform_3, window_bounds = array<i64: 64, 128>}, {pipeline_mode = #tpu.pipeline_mode<synchronous>, transform_indices = @transform_4, window_bounds = array<i64: 1, 128>}, {pipeline_mode = #tpu.pipeline_mode<synchronous>, transform_indices = @transform_5, window_bounds = array<i64: 2, 128>}]} {
    %c0_i32 = arith.constant 0 : i32
    %0 = arith.cmpi eq, %arg0, %c0_i32 : i32
    %1 = arith.extui %0 : i1 to i32
    %c0_i32_0 = arith.constant 0 : i32
    %2 = arith.cmpi ne, %1, %c0_i32_0 : i32
    scf.if %2 {
      %cst_15 = arith.constant 0.000000e+00 : f32
      %18 = vector.broadcast %cst_15 : f32 to vector<2x64xf32>
      %c0_16 = arith.constant 0 : index
      %c0_17 = arith.constant 0 : index
      %19 = vector.load %arg7[%c0_16, %c0_17] : memref<2x64xf32, #tpu.memory_space<vmem>>, vector<2x64xf32>
      tpu.vector_store %arg7[%c0_16, %c0_17], %18 {strides = array<i32>} : memref<2x64xf32, #tpu.memory_space<vmem>>, vector<2x64xf32>,
    } else {
    }
    %c0 = arith.constant 0 : index
    %c0_1 = arith.constant 0 : index
    %3 = vector.load %arg7[%c0, %c0_1] : memref<2x64xf32, #tpu.memory_space<vmem>>, vector<2x64xf32>
    %c0_2 = arith.constant 0 : index
    %c0_3 = arith.constant 0 : index
    %c0_4 = arith.constant 0 : index
    %4 = vector.load %arg1[%c0_2, %c0_3, %c0_4] : memref<2x2x512xbf16, #tpu.memory_space<vmem>>, vector<2x1x512xbf16>
    %5 = vector.shape_cast %4 : vector<2x1x512xbf16> to vector<2x512xbf16>
    %c0_5 = arith.constant 0 : index
    %c0_6 = arith.constant 0 : index
    %6 = vector.load %arg2[%c0_5, %c0_6] : memref<512x128xbf16, #tpu.memory_space<vmem>>, vector<512x64xbf16>
    %cst = arith.constant dense<0.000000e+00> : vector<2x64xf32>
    %7 = tpu.matmul %5, %6, %cst {dimension_numbers = #tpu.dot_dimension_numbers<[1], [0], [0], [1], [0, 0, 1, 1], [], []>} : vector<2x512xbf16>, vector<512x64xbf16>, vector<2x64xf32> -> vector<2x64xf32>
    %c0_7 = arith.constant 0 : index
    %c1 = arith.constant 1 : index
    %c0_8 = arith.constant 0 : index
    %8 = vector.load %arg1[%c0_7, %c1, %c0_8] : memref<2x2x512xbf16, #tpu.memory_space<vmem>>, vector<2x1x512xbf16>
    %9 = vector.shape_cast %8 : vector<2x1x512xbf16> to vector<2x512xbf16>
    %c0_9 = arith.constant 0 : index
    %c64 = arith.constant 64 : index
    %10 = vector.load %arg2[%c0_9, %c64] : memref<512x128xbf16, #tpu.memory_space<vmem>>, vector<512x64xbf16>
    %cst_10 = arith.constant dense<0.000000e+00> : vector<2x64xf32>
    %11 = tpu.matmul %9, %10, %cst_10 {dimension_numbers = #tpu.dot_dimension_numbers<[1], [0], [0], [1], [0, 0, 1, 1], [], []>} : vector<2x512xbf16>, vector<512x64xbf16>, vector<2x64xf32> -> vector<2x64xf32>
    %12 = arith.addf %7, %11 : vector<2x64xf32>
    %13 = arith.addf %3, %12 : vector<2x64xf32>
    %c0_11 = arith.constant 0 : index
    %c0_12 = arith.constant 0 : index
    %14 = vector.load %arg7[%c0_11, %c0_12] : memref<2x64xf32, #tpu.memory_space<vmem>>, vector<2x64xf32>
    tpu.vector_store %arg7[%c0_11, %c0_12], %13 {strides = array<i32>} : memref<2x64xf32, #tpu.memory_space<vmem>>, vector<2x64xf32>,
    %c0_i32_13 = arith.constant 0 : i32
    %15 = arith.cmpi eq, %arg0, %c0_i32_13 : i32
    %16 = arith.extui %15 : i1 to i32
    %c0_i32_14 = arith.constant 0 : i32
    %17 = arith.cmpi ne, %16, %c0_i32_14 : i32
    scf.if %17 {
      %c0_15 = arith.constant 0 : index
      %c0_16 = arith.constant 0 : index
      %18 = vector.load %arg7[%c0_15, %c0_16] : memref<2x64xf32, #tpu.memory_space<vmem>>, vector<2x64xf32>
      %c0_17 = arith.constant 0 : index
      %c0_18 = arith.constant 0 : index
      %19 = vector.load %arg3[%c0_17, %c0_18] : memref<1x64xf32, #tpu.memory_space<vmem>>, vector<1x64xf32>
      %20 = vector.broadcast %19 : vector<1x64xf32> to vector<2x64xf32>
      %21 = arith.addf %18, %20 : vector<2x64xf32>
      %cst_19 = arith.constant 0.000000e+00 : f32
      %22 = vector.broadcast %cst_19 : f32 to vector<2x64xf32>
      %23 = arith.maximumf %21, %22 : vector<2x64xf32>
      %24 = arith.truncf %23 : vector<2x64xf32> to vector<2x64xbf16>
      %c0_20 = arith.constant 0 : index
      %c0_21 = arith.constant 0 : index
      %25 = vector.load %arg4[%c0_20, %c0_21] : memref<64x128xbf16, #tpu.memory_space<vmem>>, vector<64x128xbf16>
      %cst_22 = arith.constant dense<0.000000e+00> : vector<2x128xf32>
      %26 = tpu.matmul %24, %25, %cst_22 {dimension_numbers = #tpu.dot_dimension_numbers<[1], [0], [0], [1], [0, 0, 1, 1], [], []>} : vector<2x64xbf16>, vector<64x128xbf16>, vector<2x128xf32> -> vector<2x128xf32>
      %c0_23 = arith.constant 0 : index
      %c0_24 = arith.constant 0 : index
      %27 = vector.load %arg5[%c0_23, %c0_24] : memref<1x128xf32, #tpu.memory_space<vmem>>, vector<1x128xf32>
      %28 = vector.broadcast %27 : vector<1x128xf32> to vector<2x128xf32>
      %29 = arith.addf %26, %28 : vector<2x128xf32>
      %c0_25 = arith.constant 0 : index
      %c0_26 = arith.constant 0 : index
      %30 = vector.load %arg6[%c0_25, %c0_26] : memref<2x128xf32, #tpu.memory_space<vmem>>, vector<2x128xf32>
      tpu.vector_store %arg6[%c0_25, %c0_26], %29 {strides = array<i32>} : memref<2x128xf32, #tpu.memory_space<vmem>>, vector<2x128xf32>,
    } else {
    }
    return
  }
  func.func @transform_0(%arg0: i32) -> (i32, i32, i32) {
    %c0_i32 = arith.constant 0 : i32
    %c0_i32_0 = arith.constant 0 : i32
    %c0_i32_1 = arith.constant 0 : i32
    return %c0_i32, %c0_i32_0, %arg0 : i32, i32, i32
  }
  func.func @transform_1(%arg0: i32) -> (i32, i32) {
    %c0_i32 = arith.constant 0 : i32
    %c0_i32_0 = arith.constant 0 : i32
    return %arg0, %c0_i32 : i32, i32
  }
  func.func @transform_2(%arg0: i32) -> (i32, i32) {
    %c0_i32 = arith.constant 0 : i32
    %c0_i32_0 = arith.constant 0 : i32
    %c0_i32_1 = arith.constant 0 : i32
    return %c0_i32, %c0_i32_0 : i32, i32
  }
  func.func @transform_3(%arg0: i32) -> (i32, i32) {
    %c0_i32 = arith.constant 0 : i32
    %c0_i32_0 = arith.constant 0 : i32
    %c0_i32_1 = arith.constant 0 : i32
    return %c0_i32, %c0_i32_0 : i32, i32
  }
  func.func @transform_4(%arg0: i32) -> (i32, i32) {
    %c0_i32 = arith.constant 0 : i32
    %c0_i32_0 = arith.constant 0 : i32
    %c0_i32_1 = arith.constant 0 : i32
    return %c0_i32, %c0_i32_0 : i32, i32
  }
  func.func @transform_5(%arg0: i32) -> (i32, i32) {
    %c0_i32 = arith.constant 0 : i32
    %c0_i32_0 = arith.constant 0 : i32
    %c0_i32_1 = arith.constant 0 : i32
    return %c0_i32, %c0_i32_0 : i32, i32
  }
}

</mosaic_0001>

<llo_original>
// kernel: liver_cnn_forward.3
$region0: #{liver_cnn_forward.3}
  #allocation0 [shape = 'u32[]', space=smem, size = 0x4, offset = 0x4, fixed_abs, tag = 'smem constant byte address 0x4 - core index']
  #allocation1 [shape = 'u32[144,128]{1,0:T(1,128)}', space=vmem, size = 0x12000, scoped, tag = 'internal scratch']
  #allocation2 [shape = 'f32[16,128]{1,0:T(8,128)}', space=vmem, size = 0x2000, scoped, tag = 'scratch operand']
  #allocation3 [shape = 'f32[8,64]{1,0:T(8,128)}', space=vmem, size = 0x1000, scoped, tag = 'scratch operand']
  %s0 = inlined_call_operand.vmem [shape: bf16[2,18,18,10], index: 0, kind: input, shape index: {}]
  %s1 = inlined_call_operand.vmem [shape: bf16[9,10,128], index: 1, kind: input, shape index: {}]
  %s2 = inlined_call_operand.vmem [shape: f32[1,64], index: 2, kind: input, shape index: {}]
  %s3 = inlined_call_operand.vmem [shape: bf16[2,8,8,64], index: 3, kind: output, shape index: {}]
  %s4 = sld [smem:[#allocation0]]
  $region61: #{liver_cnn_forward.3} parent=0
    _
  %s6 = ssub.s32 1, %s4
  %s7 = scalar_select 0, %s6, %s4
  loop: start=0, step=1, limit=98
  $region2: #{liver_cnn_forward.3} parent=0 // loop_pre_header
    _
  $region3: #{liver_cnn_forward.3} parent=0 // loop_header
    %s9 = sphi 0, %s13
    %p10 = scmp.ge.s32.totalorder %s9, 98
    %s16 = sphi 0, %s42
    %s17 = sphi 0, %s38
    %s18 = sphi 0, %s34
    %s19 = sphi 0, %s30
    %s20 = sphi 0, %s16
    %s21 = sphi 0, %s17
    %s22 = sphi 0, %s18
    %s23 = sphi 0, %s19
    %s24 = sphi 0, %s20
    %s25 = sphi 0, %s21
    %s26 = sphi 0, %s22
    %s27 = sphi 0, %s23
    %s53 = sphi 0, %s55
    %s56 = sphi 0, %s53
    %s57 = sphi 0, %s56
    %s73 = sphi 0, %s57
    %s77 = sphi 0, %s77
    %s79 = sphi 0, %s77
    %s80 = sphi 0, %s79
    %s94 = sphi 0, %s80
    %s98 = sphi 0, %s98
    %s100 = sphi 0, %s98
    %s101 = sphi 0, %s100
    %s115 = sphi 0, %s101
    %s123 = sphi 0, %s125
    %s126 = sphi 0, %s123
    %s127 = sphi 0, %s126
    %s143 = sphi 0, %s127
  $region4: #{liver_cnn_forward.3} parent=0 // loop_header_branch
    %12 = sbr.rel (%p10) target = $region8
  $region5: #{liver_cnn_forward.3} parent=0 // loop_body
    %s14 = ssub.s32 %s9, 1
    %s15 = ssub.s32 %s9, 2
    %s28 = sadd.s32 1, %s19
    %p29 = scmp.ge.s32.totalorder %s28, 3
    %s30 = scalar_select %p29, 0, %s28
    %s31 = sadd.s32 1, %s18
    %s32 = scalar_select %p29, %s31, %s18
    %p33 = scmp.ge.s32.totalorder %s32, 2
    %s34 = scalar_select %p33, 0, %s32
    %s35 = sadd.s32 1, %s17
    %s36 = scalar_select %p33, %s35, %s17
    %p37 = scmp.ge.s32.totalorder %s36, 8
    %s38 = scalar_select %p37, 0, %s36
    %s39 = sadd.s32 1, %s16
    %s40 = scalar_select %p37, %s39, %s16
    %p41 = scmp.ge.s32.totalorder %s40, 2
    %s42 = scalar_select %p41, 0, %s40
    %s43 = smul.u32 %s17, 2
    %s44 = sadd.s32 %s43, %s18
    %s45 = sadd.s32 %s44, %s19
    %s46 = smul.u32 %s38, 2
    %s47 = sadd.s32 %s46, %s34
    %s48 = sadd.s32 %s47, %s30
    %s49 = ssub.s32 %s16, %s42
    %s50 = ssub.s32 %s45, %s48
    %s51 = sor.u32 %s49, %s50
    %p52 = scmp.eq.s32.totalorder %s51, 0
    %s54 = sadd.s32 %s53, 1
    %s55 = scalar_select %p52, %s53, %s54
    %p58 = pneg %p52
    %p59 = scmp.eq.s32.totalorder %s9, 95
    %p60 = por %p58, %p59
    %p61 = scmp.ne.s32.totalorder %s53, %s56
    %p62 = scmp.eq.s32.totalorder %s9, 0
    %p63 = por %p61, %p62
    %p64 = scmp.ne.s32.totalorder %s53, %s56
    %p65 = scmp.eq.s32.totalorder %s14, 95
    %p66 = por %p64, %p65
    %p67 = scmp.ne.s32.totalorder %s56, %s57
    %p68 = scmp.eq.s32.totalorder %s14, 0
    %p69 = por %p67, %p68
    %p70 = scmp.ne.s32.totalorder %s56, %s57
    %p71 = scmp.eq.s32.totalorder %s15, 95
    %p72 = por %p70, %p71
    %p74 = scmp.ne.s32.totalorder %s57, %s73
    %p75 = scmp.eq.s32.totalorder %s15, 0
    %p76 = por %p74, %p75
    %s78 = sadd.s32 %s77, 1
    %p81 = scmp.eq.s32.totalorder %s9, 95
    %p82 = scmp.ne.s32.totalorder %s77, %s79
    %p83 = scmp.eq.s32.totalorder %s9, 0
    %p84 = por %p82, %p83
    %p85 = scmp.ne.s32.totalorder %s77, %s79
    %p86 = scmp.eq.s32.totalorder %s14, 95
    %p87 = por %p85, %p86
    %p88 = scmp.ne.s32.totalorder %s79, %s80
    %p89 = scmp.eq.s32.totalorder %s14, 0
    %p90 = por %p88, %p89
    %p91 = scmp.ne.s32.totalorder %s79, %s80
    %p92 = scmp.eq.s32.totalorder %s15, 95
    %p93 = por %p91, %p92
    %p95 = scmp.ne.s32.totalorder %s80, %s94
    %p96 = scmp.eq.s32.totalorder %s15, 0
    %p97 = por %p95, %p96
    %s99 = sadd.s32 %s98, 1
    %p102 = scmp.eq.s32.totalorder %s9, 95
    %p103 = scmp.ne.s32.totalorder %s98, %s100
    %p104 = scmp.eq.s32.totalorder %s9, 0
    %p105 = por %p103, %p104
    %p106 = scmp.ne.s32.totalorder %s98, %s100
    %p107 = scmp.eq.s32.totalorder %s14, 95
    %p108 = por %p106, %p107
    %p109 = scmp.ne.s32.totalorder %s100, %s101
    %p110 = scmp.eq.s32.totalorder %s14, 0
    %p111 = por %p109, %p110
    %p112 = scmp.ne.s32.totalorder %s100, %s101
    %p113 = scmp.eq.s32.totalorder %s15, 95
    %p114 = por %p112, %p113
    %p116 = scmp.ne.s32.totalorder %s101, %s115
    %p117 = scmp.eq.s32.totalorder %s15, 0
    %p118 = por %p116, %p117
    %s119 = ssub.s32 %s16, %s42
    %s120 = ssub.s32 %s17, %s38
    %s121 = sor.u32 %s119, %s120
    %p122 = scmp.eq.s32.totalorder %s121, 0
    %s124 = sadd.s32 %s123, 1
    %s125 = scalar_select %p122, %s123, %s124
    %p128 = pneg %p122
    %p129 = scmp.eq.s32.totalorder %s9, 95
    %p130 = por %p128, %p129
    %p131 = scmp.ne.s32.totalorder %s123, %s126
    %p132 = scmp.eq.s32.totalorder %s9, 0
    %p133 = por %p131, %p132
    %p134 = scmp.ne.s32.totalorder %s123, %s126
    %p135 = scmp.eq.s32.totalorder %s14, 95
    %p136 = por %p134, %p135
    %p137 = scmp.ne.s32.totalorder %s126, %s127
    %p138 = scmp.eq.s32.totalorder %s14, 0
    %p139 = por %p137, %p138
    %p140 = scmp.ne.s32.totalorder %s126, %s127
    %p141 = scmp.eq.s32.totalorder %s15, 95
    %p142 = por %p140, %p141
    %p144 = scmp.ne.s32.totalorder %s127, %s143
    %p145 = scmp.eq.s32.totalorder %s15, 0
    %p146 = por %p144, %p145
    %p147 = scmp.le.s32.totalorder 1, %s9
    %p148 = scmp.lt.s32.totalorder %s9, 97
    %p149 = pnand %p147, %p148
    %p150 = pneg %p149
    // Predicated region
    $region9: #{liver_cnn_forward.3} parent=5 // pred_check
      _
    $region10: #{liver_cnn_forward.3} parent=5 // pred_check_branch
      %152 = sbr.rel (%p149) target = $region12
    $region11: #{liver_cnn_forward.3} parent=5 // pred_region
      %s153 = ssub.s32 %s9, 1
      // Predicated region
      $region13: #{liver_cnn_forward.3} parent=11 // pred_check
        %p154 = pneg %p90
      $region14: #{liver_cnn_forward.3} parent=11 // pred_check_branch
        %156 = sbr.rel (%p154) target = $region16
      $region15: #{liver_cnn_forward.3} parent=11 // pred_region
        _
      $region16: #{liver_cnn_forward.3} parent=11 // pred_fallthru
        _
      // Predicated region
      $region17: #{liver_cnn_forward.3} parent=11 // pred_check
        %p157 = pneg %p111
      $region18: #{liver_cnn_forward.3} parent=11 // pred_check_branch
        %159 = sbr.rel (%p157) target = $region20
      $region19: #{liver_cnn_forward.3} parent=11 // pred_region
        _
      $region20: #{liver_cnn_forward.3} parent=11 // pred_fallthru
        _
    $region12: #{liver_cnn_forward.3} parent=5 // pred_fallthru
      _
    %p160 = scmp.lt.s32.totalorder %s9, 96
    // Predicated region
    $region21: #{liver_cnn_forward.3} parent=5 // pred_check
      %p161 = pneg %p160
    $region22: #{liver_cnn_forward.3} parent=5 // pred_check_branch
      %163 = sbr.rel (%p161) target = $region24
    $region23: #{liver_cnn_forward.3} parent=5 // pred_region
      // Predicated region
      $region25: #{liver_cnn_forward.3} parent=23 // pred_check
        %p164 = pneg %p63
      $region26: #{liver_cnn_forward.3} parent=23 // pred_check_branch
        %166 = sbr.rel (%p164) target = $region28
      $region27: #{liver_cnn_forward.3} parent=23 // pred_region
        %s167 = smul.u32 %s17, 2
        %s168 = sadd.s32 %s167, %s18
        %s169 = sadd.s32 %s168, %s19
        %p170 = scmp.lt.s32.totalorder %s16, 1
        %s171 = scalar_select %p170, %s16, 1
        %p172 = scmp.lt.s32.totalorder %s169, 17
        %s173 = scalar_select %p172, %s169, 17
        %s174 = smul.addr %s173, 3
        %s175 = smul.addr %s171, 54
        %s176 = sadd.s32 %s174, %s175
        %s177 = smul.addr %s176, 4
        %s178 = scalar_lea.vmem %s0, %s177
        %s179 = smul.u32 %s17, 2
        %s180 = sadd.s32 %s179, %s18
        %s181 = sadd.s32 %s180, %s19
      $region28: #{liver_cnn_forward.3} parent=23 // pred_fallthru
        _
    $region24: #{liver_cnn_forward.3} parent=5 // pred_fallthru
      _
    %p182 = scmp.le.s32.totalorder 1, %s9
    %p183 = scmp.lt.s32.totalorder %s9, 97
    %p184 = pnand %p182, %p183
    %p185 = pneg %p184
    // Predicated region
    $region29: #{liver_cnn_forward.3} parent=5 // pred_check
      _
    $region30: #{liver_cnn_forward.3} parent=5 // pred_check_branch
      %187 = sbr.rel (%p184) target = $region32
    $region31: #{liver_cnn_forward.3} parent=5 // pred_region
      %s188 = ssub.s32 %s9, 1
      %s189 = smul.u32 %s21, 2
      %s190 = sadd.s32 %s189, %s22
      %s191 = sadd.s32 %s190, %s23
      %p192 = scmp.lt.s32.totalorder %s20, 1
      %s193 = scalar_select %p192, %s20, 1
      %p194 = scmp.lt.s32.totalorder %s191, 17
      %s195 = scalar_select %p194, %s191, 17
      %s196 = smul.addr %s195, 3
      %s197 = smul.addr %s193, 54
      %s198 = sadd.s32 %s196, %s197
      %s199 = smul.addr %s198, 4
      %s200 = scalar_lea.vmem %s0, %s199
      %p201 = pneg %p69
      %p202 = pneg %p66
      %p203 = pneg %p90
      %p204 = pneg %p87
      %p205 = pneg %p111
      %p206 = pneg %p108
      %p207 = pneg %p139
      %p208 = pneg %p136
      %p209 = scmp.lt.s32.totalorder %s20, 1
      %s210 = scalar_select %p209, %s20, 1
      %p211 = scmp.lt.s32.totalorder %s21, 7
      %s212 = scalar_select %p211, %s21, 7
      %s213 = smul.addr %s210, 8
      %s214 = sadd.s32 %s212, %s213
      %s215 = smul.addr %s214, 4
      %s216 = scalar_lea.vmem %s3, %s215
      %s217 = smul.u32 %s21, 2
      %s218 = sadd.s32 %s217, %s22
      %s219 = sadd.s32 %s218, %s23
      %p220 = scmp.lt.s32.totalorder %s20, 1
      %s221 = scalar_select %p220, %s20, 1
      %p222 = scmp.lt.s32.totalorder %s219, 17
      %s223 = scalar_select %p222, %s219, 17
      %s224 = smul.addr %s223, 3
      %s225 = smul.addr %s221, 54
      %s226 = sadd.s32 %s224, %s225
      %s227 = smul.addr %s226, 4
      %s228 = scalar_lea.vmem %s0, %s227
      %s229 = smul.u32 %s21, 2
      %s230 = sadd.s32 %s229, %s22
      %s231 = sadd.s32 %s230, %s23
      %p232 = scmp.lt.s32.totalorder %s20, 1
      %s233 = scalar_select %p232, %s20, 1
      %p234 = scmp.lt.s32.totalorder %s21, 7
      %s235 = scalar_select %p234, %s21, 7
      %s236 = smul.addr %s233, 8
      %s237 = sadd.s32 %s235, %s236
      %s238 = smul.addr %s237, 4
      %s239 = scalar_lea.vmem %s3, %s238
      %p241 = scmp.eq.s32.totalorder %s23, 0
      // Predicated region
      $region33: #{liver_cnn_forward.3} parent=31 // pred_check
        %p242 = pneg %p241
      $region34: #{liver_cnn_forward.3} parent=31 // pred_check_branch
        %244 = sbr.rel (%p242) target = $region36
      $region35: #{liver_cnn_forward.3} parent=31 // pred_region
        %245 = vst [vmem:[#allocation2] sm:$0xff] 0.0
        %246 = vst [vmem:[#allocation2 + $0x8] sm:$0xff] 0.0
      $region36: #{liver_cnn_forward.3} parent=31 // pred_fallthru
        _
      %v247 = vld [vmem:[#allocation2] sm:$0xff]
      %v248 = vld [vmem:[#allocation2 + $0x8] sm:$0xff]
      %v249 = vld [vmem:[%s228] sm:$0xf]
      %v250 = vld [vmem:[%s228 + $0x4] sm:$0xf]
      %s251 = smul.u32 %s23, 3
      %s252 = smul.u32 %s251, 2
      %s253 = smul.addr %s252, 4
      %s254 = scalar_lea.vmem %s1, %s253
      %v255 = vld [vmem:[%s254] sm:$0xf]
      %v256 = vld [vmem:[%s254 + $0x4] sm:$0x1]
      %v259 = vunpack.c.l.b16 %v249
      %v260 = vunpack.c.l.b16 %v250
      %v261 = vpack.c.b16 %v260, %v259
      %v264 = vunpack.c.l.b16 %v255
      %v265 = vunpack.c.l.b16 %v256
      %v266 = vpack.c.b16 %v265, %v264
      %vm267 = vcmask 80896
      %v269 = vsel %vm267, %v261, 0
      %vm271 = vcmask 1044480
      %v273 = vsel %vm271, %v266, 0
      %275 = vmatprep.subr.bf16.mxu0 0
      %276 = vmatpush1.bf16.msra.mxu0 %v273
      %277 = vmatprep.subr.bf16.mxu0 0
      %278 = vmatpush1.bf16.msra.mxu0 0
      %279 = vmatprep.subr.bf16.mxu0 0
      %280 = vmatpush1.bf16.msra.mxu0 0
      %281 = vmatprep.subr.bf16.mxu0 0
      %282 = vmatpush1.bf16.msra.mxu0 0
      %283 = vmatprep.subr.bf16.mxu0 0
      %284 = vmatpush1.bf16.msra.mxu0 0
      %285 = vmatprep.subr.bf16.mxu0 0
      %286 = vmatpush1.bf16.msra.mxu0 0
      %287 = vmatprep.subr.bf16.mxu0 0
      %288 = vmatpush1.bf16.msra.mxu0 0
      %289 = vmatprep.subr.bf16.mxu0 0
      %290 = vmatpush1.bf16.msra.mxu0 0
      %291 = vmatprep.subr.bf16.mxu0 0
      %292 = vmatpush1.bf16.msra.mxu0 0
      %293 = vmatprep.subr.bf16.mxu0 0
      %294 = vmatpush1.bf16.msra.mxu0 0
      %295 = vmatprep.subr.bf16.mxu0 0
      %296 = vmatpush1.bf16.msra.mxu0 0
      %297 = vmatprep.subr.bf16.mxu0 0
      %298 = vmatpush1.bf16.msra.mxu0 0
      %299 = vmatprep.subr.bf16.mxu0 0
      %300 = vmatpush1.bf16.msra.mxu0 0
      %301 = vmatprep.subr.bf16.mxu0 0
      %302 = vmatpush1.bf16.msra.mxu0 0
      %303 = vmatprep.subr.bf16.mxu0 0
      %304 = vmatpush1.bf16.msra.mxu0 0
      %305 = vmatprep.subr.bf16.mxu0 0
      %306 = vmatpush1.bf16.msra.mxu0 0
      %307 = vmatprep.mubr.bf16.mxu0 0
      %308 = vmatmul.mubr.bf16.gmra.mrb[0].mxu0 %v269
      %v309 = vpop.f32.mrb[0].mxu0
      %v310 = vadd.f32 0.0, %v309
      %v311 = vpop.f32.mrb[0].mxu0
      %v312 = vpop.f32.mrb[0].mxu0
      %v313 = vadd.f32 0.0, %v312
      %v314 = vpop.f32.mrb[0].mxu0
      %315 = vdwg.mxu0
      %v316 = vadd.f32 %v247, %v310
      %v317 = vadd.f32 %v248, %v313
      %v318 = vld [vmem:[%s228] sm:$0xf]
      %v319 = vld [vmem:[%s228 + $0x4] sm:$0xf]
      %v320 = vld [vmem:[%s228 + $0x8] sm:$0x1]
      %s321 = sadd.s32 %s251, 1
      %s322 = smul.u32 %s321, 2
      %s323 = smul.addr %s322, 4
      %s324 = scalar_lea.vmem %s1, %s323
      %v325 = vld [vmem:[%s324] sm:$0xf]
      %v326 = vld [vmem:[%s324 + $0x4] sm:$0x1]
      %v330 = vunpack.c.l.b16 %v318
      %v331 = vunpack.c.l.b16 %v319
      %v332 = vunpack.c.l.b16 %v320
      %v333 = vpack.c.b16 %v331, %v330
      %v334 = vpack.c.b16 %v332, %v332
      %vm335 = vsmask.f32 7424
      %v337 = vshrl.u32 %v333, 16
      %v339 = vshll.u32 %v333, 16
      %v341 = vrot.slane %v339, 1
      %v342 = vor.u32 %v337, %v341
      %v344 = vshll.u32 %v334, 16
      %v346 = vrot.slane %v344, 1
      %v347 = vsel %vm335, %v342, %v346
      %v350 = vunpack.c.l.b16 %v325
      %v351 = vunpack.c.l.b16 %v326
      %v352 = vpack.c.b16 %v351, %v350
      %v354 = vsel %vm267, %v347, 0
      %v357 = vsel %vm271, %v352, 0
      %359 = vmatprep.subr.bf16.mxu0 0
      %360 = vmatpush1.bf16.msra.mxu0 %v357
      %361 = vmatprep.subr.bf16.mxu0 0
      %362 = vmatpush1.bf16.msra.mxu0 0
      %363 = vmatprep.subr.bf16.mxu0 0
      %364 = vmatpush1.bf16.msra.mxu0 0
      %365 = vmatprep.subr.bf16.mxu0 0
      %366 = vmatpush1.bf16.msra.mxu0 0
      %367 = vmatprep.subr.bf16.mxu0 0
      %368 = vmatpush1.bf16.msra.mxu0 0
      %369 = vmatprep.subr.bf16.mxu0 0
      %370 = vmatpush1.bf16.msra.mxu0 0
      %371 = vmatprep.subr.bf16.mxu0 0
      %372 = vmatpush1.bf16.msra.mxu0 0
      %373 = vmatprep.subr.bf16.mxu0 0
      %374 = vmatpush1.bf16.msra.mxu0 0
      %375 = vmatprep.subr.bf16.mxu0 0
      %376 = vmatpush1.bf16.msra.mxu0 0
      %377 = vmatprep.subr.bf16.mxu0 0
      %378 = vmatpush1.bf16.msra.mxu0 0
      %379 = vmatprep.subr.bf16.mxu0 0
      %380 = vmatpush1.bf16.msra.mxu0 0
      %381 = vmatprep.subr.bf16.mxu0 0
      %382 = vmatpush1.bf16.msra.mxu0 0
      %383 = vmatprep.subr.bf16.mxu0 0
      %384 = vmatpush1.bf16.msra.mxu0 0
      %385 = vmatprep.subr.bf16.mxu0 0
      %386 = vmatpush1.bf16.msra.mxu0 0
      %387 = vmatprep.subr.bf16.mxu0 0
      %388 = vmatpush1.bf16.msra.mxu0 0
      %389 = vmatprep.subr.bf16.mxu0 0
      %390 = vmatpush1.bf16.msra.mxu0 0
      %391 = vmatprep.mubr.bf16.mxu0 0
      %392 = vmatmul.mubr.bf16.gmra.mrb[0].mxu0 %v354
      %v393 = vpop.f32.mrb[0].mxu0
      %v394 = vadd.f32 0.0, %v393
      %v395 = vpop.f32.mrb[0].mxu0
      %v396 = vpop.f32.mrb[0].mxu0
      %v397 = vadd.f32 0.0, %v396
      %v398 = vpop.f32.mrb[0].mxu0
      %399 = vdwg.mxu0
      %v400 = vadd.f32 %v316, %v394
      %v401 = vadd.f32 %v317, %v397
      %v402 = vld [vmem:[%s228] sm:$0xe]
      %s403 = sadd.s32 %s251, 2
      %s404 = smul.u32 %s403, 2
      %s405 = smul.addr %s404, 4
      %s406 = scalar_lea.vmem %s1, %s405
      %v407 = vld [vmem:[%s406] sm:$0xf]
      %v408 = vld [vmem:[%s406 + $0x4] sm:$0x1]
      %v410 = vunpack.c.l.b16 %v402
      %v411 = vpack.c.b16 %v331, %v410
      %vm412 = vcmask 1046528
      %v413 = vrot.slane %v411, 1
      %v414 = vrot.slane %v334, 1
      %v415 = vsel %vm412, %v413, %v414
      %v418 = vunpack.c.l.b16 %v407
      %v419 = vunpack.c.l.b16 %v408
      %v420 = vpack.c.b16 %v419, %v418
      %v422 = vsel %vm267, %v415, 0
      %v425 = vsel %vm271, %v420, 0
      %427 = vmatprep.subr.bf16.mxu0 0
      %428 = vmatpush1.bf16.msra.mxu0 %v425
      %429 = vmatprep.subr.bf16.mxu0 0
      %430 = vmatpush1.bf16.msra.mxu0 0
      %431 = vmatprep.subr.bf16.mxu0 0
      %432 = vmatpush1.bf16.msra.mxu0 0
      %433 = vmatprep.subr.bf16.mxu0 0
      %434 = vmatpush1.bf16.msra.mxu0 0
      %435 = vmatprep.subr.bf16.mxu0 0
      %436 = vmatpush1.bf16.msra.mxu0 0
      %437 = vmatprep.subr.bf16.mxu0 0
      %438 = vmatpush1.bf16.msra.mxu0 0
      %439 = vmatprep.subr.bf16.mxu0 0
      %440 = vmatpush1.bf16.msra.mxu0 0
      %441 = vmatprep.subr.bf16.mxu0 0
      %442 = vmatpush1.bf16.msra.mxu0 0
      %443 = vmatprep.subr.bf16.mxu0 0
      %444 = vmatpush1.bf16.msra.mxu0 0
      %445 = vmatprep.subr.bf16.mxu0 0
      %446 = vmatpush1.bf16.msra.mxu0 0
      %447 = vmatprep.subr.bf16.mxu0 0
      %448 = vmatpush1.bf16.msra.mxu0 0
      %449 = vmatprep.subr.bf16.mxu0 0
      %450 = vmatpush1.bf16.msra.mxu0 0
      %451 = vmatprep.subr.bf16.mxu0 0
      %452 = vmatpush1.bf16.msra.mxu0 0
      %453 = vmatprep.subr.bf16.mxu0 0
      %454 = vmatpush1.bf16.msra.mxu0 0
      %455 = vmatprep.subr.bf16.mxu0 0
      %456 = vmatpush1.bf16.msra.mxu0 0
      %457 = vmatprep.subr.bf16.mxu0 0
      %458 = vmatpush1.bf16.msra.mxu0 0
      %459 = vmatprep.mubr.bf16.mxu0 0
      %460 = vmatmul.mubr.bf16.gmra.mrb[0].mxu0 %v422
      %v461 = vpop.f32.mrb[0].mxu0
      %v462 = vadd.f32 0.0, %v461
      %v463 = vpop.f32.mrb[0].mxu0
      %v464 = vpop.f32.mrb[0].mxu0
      %v465 = vadd.f32 0.0, %v464
      %v466 = vpop.f32.mrb[0].mxu0
      %467 = vdwg.mxu0
      %v468 = vadd.f32 %v400, %v462
      %v469 = vadd.f32 %v401, %v465
      %470 = vst [vmem:[#allocation2] sm:$0xff] %v468
      %471 = vst [vmem:[#allocation2 + $0x8] sm:$0xff] %v469
      %p472 = scmp.eq.s32.totalorder %s23, 2
      // Predicated region
      $region37: #{liver_cnn_forward.3} parent=31 // pred_check
        %p473 = pneg %p472
      $region38: #{liver_cnn_forward.3} parent=31 // pred_check_branch
        %475 = sbr.rel (%p473) target = $region40
      $region39: #{liver_cnn_forward.3} parent=31 // pred_region
        %v476 = vld [vmem:[#allocation2] sm:$0xff]
        %v477 = vld [vmem:[#allocation2 + $0x8] sm:$0xff]
        %480 = vrot.lane.b32.xlu0 %v476, 64
        %v481 = vpop.permute.xlu0 %480
        %482 = vrot.lane.b32.xlu0 %v477, 64
        %v483 = vpop.permute.xlu0 %482
        %v486 = vmax.f32 %v476, %v481
        %v487 = vmax.f32 %v477, %v483
        %v490 = vcombine.high %v486, %v486
        %v492 = vunpack.c.l.s4 1983009808
        %v493 = vunpack.c.0.s8 %v492
        %v494 = vlaneseq
        %v495 = vshrl.u32 %v494, 7
        %v496 = vsub.s32 %v493, %v495
        %v497 = vrot.slane %v486, %v496
        %v499 = vunpack.c.l.s4 1983009808
        %v500 = vunpack.c.0.s8 %v499
        %v501 = vlaneseq
        %v502 = vshrl.u32 %v501, 7
        %v503 = vsub.s32 %v500, %v502
        %v504 = vrot.slane %v490, %v503
        %v505 = vcombine.high %v497, %v497
        %v506 = vcombine.high %v504, %v504
        %v507 = vcombine.high %v487, %v487
        %v509 = vunpack.c.l.s4 1983009808
        %v510 = vunpack.c.0.s8 %v509
        %v511 = vlaneseq
        %v512 = vshrl.u32 %v511, 7
        %v513 = vsub.s32 %v510, %v512
        %v514 = vrot.slane %v487, %v513
        %v516 = vunpack.c.l.s4 1983009808
        %v517 = vunpack.c.0.s8 %v516
        %v518 = vlaneseq
        %v519 = vshrl.u32 %v518, 7
        %v520 = vsub.s32 %v517, %v519
        %v521 = vrot.slane %v507, %v520
        %v522 = vcombine.high %v514, %v514
        %v523 = vcombine.high %v521, %v521
        %v532 = vrot.slane %v497, 7
        %v533 = vrot.slane %v532, 2
        %v534 = vrot.slane %v505, 7
        %v535 = vrot.slane %v534, 2
        %v536 = vrot.slane %v504, 7
        %v537 = vrot.slane %v536, 2
        %v538 = vrot.slane %v506, 7
        %v539 = vrot.slane %v538, 2
        %v540 = vrot.slane %v514, 7
        %v541 = vrot.slane %v540, 2
        %v542 = vrot.slane %v522, 7
        %v543 = vrot.slane %v542, 2
        %v544 = vrot.slane %v521, 7
        %v545 = vrot.slane %v544, 2
        %v546 = vrot.slane %v523, 7
        %v547 = vrot.slane %v546, 2
        %v556 = vmax.f32 %v497, %v533
        %v557 = vmax.f32 %v505, %v535
        %v558 = vmax.f32 %v504, %v537
        %v559 = vmax.f32 %v506, %v539
        %v560 = vmax.f32 %v514, %v541
        %v561 = vmax.f32 %v522, %v543
        %v562 = vmax.f32 %v521, %v545
        %v563 = vmax.f32 %v523, %v547
        %p564 = scmp.eq.s32.totalorder %s22, 0
        // Predicated region
        $region41: #{liver_cnn_forward.3} parent=39 // pred_check
          %p565 = pneg %p564
        $region42: #{liver_cnn_forward.3} parent=39 // pred_check_branch
          %567 = sbr.rel (%p565) target = $region44
        $region43: #{liver_cnn_forward.3} parent=39 // pred_region
          %v576 = vlaneseq
          %v577 = vshrl.u32 %v576, 7
          %v578 = vsub.s32 0, %v577
          %v579 = vrot.slane %v556, %v578
          %v580 = vlaneseq
          %v581 = vshrl.u32 %v580, 7
          %v582 = vsub.s32 0, %v581
          %v583 = vrot.slane %v557, %v582
          %v584 = vlaneseq
          %v585 = vshrl.u32 %v584, 7
          %v586 = vsub.s32 0, %v585
          %v587 = vrot.slane %v558, %v586
          %v588 = vlaneseq
          %v589 = vshrl.u32 %v588, 7
          %v590 = vsub.s32 0, %v589
          %v591 = vrot.slane %v559, %v590
          %v592 = vlaneseq
          %v593 = vshrl.u32 %v592, 7
          %v594 = vsub.s32 0, %v593
          %v595 = vrot.slane %v560, %v594
          %v596 = vlaneseq
          %v597 = vshrl.u32 %v596, 7
          %v598 = vsub.s32 0, %v597
          %v599 = vrot.slane %v561, %v598
          %v600 = vlaneseq
          %v601 = vshrl.u32 %v600, 7
          %v602 = vsub.s32 0, %v601
          %v603 = vrot.slane %v562, %v602
          %v604 = vlaneseq
          %v605 = vshrl.u32 %v604, 7
          %v606 = vsub.s32 0, %v605
          %v607 = vrot.slane %v563, %v606
          %vm608 = vcmask 1041409
          %v609 = vsel %vm608, %v583, %v579
          %vm610 = vcmask 1042434
          %v611 = vsel %vm610, %v587, %v609
          %vm612 = vcmask 1043459
          %v613 = vsel %vm612, %v591, %v611
          %vm614 = vcmask 1044484
          %v615 = vsel %vm614, %v595, %v613
          %vm616 = vcmask 1045509
          %v617 = vsel %vm616, %v599, %v615
          %vm618 = vcmask 1046534
          %v619 = vsel %vm618, %v603, %v617
          %vm620 = vcmask 1047559
          %v621 = vsel %vm620, %v607, %v619
          %vm623 = vcmask 523264
          %624 = vst.msk [vmem:[#allocation3] sm:$0xff] %vm623, %v621
        $region44: #{liver_cnn_forward.3} parent=39 // pred_fallthru
          _
        %p625 = scmp.eq.s32.totalorder %s22, 1
        // Predicated region
        $region45: #{liver_cnn_forward.3} parent=39 // pred_check
          %p626 = pneg %p625
        $region46: #{liver_cnn_forward.3} parent=39 // pred_check_branch
          %628 = sbr.rel (%p626) target = $region48
        $region47: #{liver_cnn_forward.3} parent=39 // pred_region
          %v629 = vld [vmem:[#allocation3] sm:$0xff]
          %v638 = vlaneseq
          %v639 = vshrl.u32 %v638, 7
          %v640 = vsub.s32 0, %v639
          %v641 = vrot.slane %v556, %v640
          %v642 = vlaneseq
          %v643 = vshrl.u32 %v642, 7
          %v644 = vsub.s32 0, %v643
          %v645 = vrot.slane %v557, %v644
          %v646 = vlaneseq
          %v647 = vshrl.u32 %v646, 7
          %v648 = vsub.s32 0, %v647
          %v649 = vrot.slane %v558, %v648
          %v650 = vlaneseq
          %v651 = vshrl.u32 %v650, 7
          %v652 = vsub.s32 0, %v651
          %v653 = vrot.slane %v559, %v652
          %v654 = vlaneseq
          %v655 = vshrl.u32 %v654, 7
          %v656 = vsub.s32 0, %v655
          %v657 = vrot.slane %v560, %v656
          %v658 = vlaneseq
          %v659 = vshrl.u32 %v658, 7
          %v660 = vsub.s32 0, %v659
          %v661 = vrot.slane %v561, %v660
          %v662 = vlaneseq
          %v663 = vshrl.u32 %v662, 7
          %v664 = vsub.s32 0, %v663
          %v665 = vrot.slane %v562, %v664
          %v666 = vlaneseq
          %v667 = vshrl.u32 %v666, 7
          %v668 = vsub.s32 0, %v667
          %v669 = vrot.slane %v563, %v668
          %vm670 = vcmask 1041409
          %v671 = vsel %vm670, %v645, %v641
          %vm672 = vcmask 1042434
          %v673 = vsel %vm672, %v649, %v671
          %vm674 = vcmask 1043459
          %v675 = vsel %vm674, %v653, %v673
          %vm676 = vcmask 1044484
          %v677 = vsel %vm676, %v657, %v675
          %vm678 = vcmask 1045509
          %v679 = vsel %vm678, %v661, %v677
          %vm680 = vcmask 1046534
          %v681 = vsel %vm680, %v665, %v679
          %vm682 = vcmask 1047559
          %v683 = vsel %vm682, %v669, %v681
          %v685 = vmax.f32 %v629, %v683
          %v686 = vld [vmem:[%s2] sm:$0x1]
          %v688 = vlaneseq
          %v689 = vshrl.u32 %v688, 7
          %v690 = vsub.s32 0, %v689
          %v691 = vrot.slane %v686, %v690
          %v693 = vadd.f32 %v685, %v691
          %v694 = vmax.f32 %v693, 0.0
          %v695 = vpack.c.bf16 %v694, %v694
          %vm696 = vcmask 519168
          %697 = vst.msk [vmem:[%s239] sm:$0xf] %vm696, %v695
        $region48: #{liver_cnn_forward.3} parent=39 // pred_fallthru
          _
      $region40: #{liver_cnn_forward.3} parent=31 // pred_fallthru
        _
      %p698 = scmp.lt.s32.totalorder %s20, 1
      %s699 = scalar_select %p698, %s20, 1
      %p700 = scmp.lt.s32.totalorder %s21, 7
      %s701 = scalar_select %p700, %s21, 7
      %s702 = smul.addr %s699, 8
      %s703 = sadd.s32 %s701, %s702
      %s704 = smul.addr %s703, 4
      %s705 = scalar_lea.vmem %s3, %s704
      // Predicated region
      $region49: #{liver_cnn_forward.3} parent=31 // pred_check
        %p706 = pneg %p136
      $region50: #{liver_cnn_forward.3} parent=31 // pred_check_branch
        %708 = sbr.rel (%p706) target = $region52
      $region51: #{liver_cnn_forward.3} parent=31 // pred_region
        _
      $region52: #{liver_cnn_forward.3} parent=31 // pred_fallthru
        _
    $region32: #{liver_cnn_forward.3} parent=5 // pred_fallthru
      _
    %p709 = scmp.le.s32.totalorder 2, %s9
    // Predicated region
    $region53: #{liver_cnn_forward.3} parent=5 // pred_check
      %p710 = pneg %p709
    $region54: #{liver_cnn_forward.3} parent=5 // pred_check_branch
      %712 = sbr.rel (%p710) target = $region56
    $region55: #{liver_cnn_forward.3} parent=5 // pred_region
      %s713 = ssub.s32 %s9, 2
      // Predicated region
      $region57: #{liver_cnn_forward.3} parent=55 // pred_check
        %p714 = pneg %p142
      $region58: #{liver_cnn_forward.3} parent=55 // pred_check_branch
        %716 = sbr.rel (%p714) target = $region60
      $region59: #{liver_cnn_forward.3} parent=55 // pred_region
        %p717 = scmp.lt.s32.totalorder %s24, 1
        %s718 = scalar_select %p717, %s24, 1
        %p719 = scmp.lt.s32.totalorder %s25, 7
        %s720 = scalar_select %p719, %s25, 7
        %s721 = smul.addr %s718, 8
        %s722 = sadd.s32 %s720, %s721
        %s723 = smul.addr %s722, 4
        %s724 = scalar_lea.vmem %s3, %s723
      $region60: #{liver_cnn_forward.3} parent=55 // pred_fallthru
        _
    $region56: #{liver_cnn_forward.3} parent=5 // pred_fallthru
      _
  $region6: #{liver_cnn_forward.3} parent=0 // loop_footer
    %s13 = sadd.s32 1, %s9
  $region7: #{liver_cnn_forward.3} parent=0 // loop_footer_branch
    %8 = sbr.rel target = $region3
  $region8: #{liver_cnn_forward.3} parent=0 // loop_exit
    _

// kernel: liver_cnn_forward.4
$region0: #{liver_cnn_forward.4}
  #allocation0 [shape = 'u32[]', space=smem, size = 0x4, offset = 0x4, fixed_abs, tag = 'smem constant byte address 0x4 - core index']
  #allocation1 [shape = 'u32[144,128]{1,0:T(1,128)}', space=vmem, size = 0x12000, scoped, tag = 'internal scratch']
  #allocation2 [shape = 'f32[8,128]{1,0:T(8,128)}', space=vmem, size = 0x1000, scoped, tag = 'scratch operand']
  #allocation3 [shape = 'f32[4,64]{1,0:T(4,128)}', space=vmem, size = 0x800, scoped, tag = 'scratch operand']
  %s0 = inlined_call_operand.vmem [shape: bf16[2,10,10,96], index: 0, kind: input, shape index: {}]
  %s1 = inlined_call_operand.vmem [shape: bf16[9,96,128], index: 1, kind: input, shape index: {}]
  %s2 = inlined_call_operand.vmem [shape: f32[1,64], index: 2, kind: input, shape index: {}]
  %s3 = inlined_call_operand.vmem [shape: bf16[2,4,4,64], index: 3, kind: output, shape index: {}]
  %s4 = sld [smem:[#allocation0]]
  $region61: #{liver_cnn_forward.4} parent=0
    _
  %s6 = ssub.s32 1, %s4
  %s7 = scalar_select 0, %s6, %s4
  loop: start=0, step=1, limit=50
  $region2: #{liver_cnn_forward.4} parent=0 // loop_pre_header
    _
  $region3: #{liver_cnn_forward.4} parent=0 // loop_header
    %s9 = sphi 0, %s13
    %p10 = scmp.ge.s32.totalorder %s9, 50
    %s16 = sphi 0, %s42
    %s17 = sphi 0, %s38
    %s18 = sphi 0, %s34
    %s19 = sphi 0, %s30
    %s20 = sphi 0, %s16
    %s21 = sphi 0, %s17
    %s22 = sphi 0, %s18
    %s23 = sphi 0, %s19
    %s24 = sphi 0, %s20
    %s25 = sphi 0, %s21
    %s26 = sphi 0, %s22
    %s27 = sphi 0, %s23
    %s53 = sphi 0, %s55
    %s56 = sphi 0, %s53
    %s57 = sphi 0, %s56
    %s73 = sphi 0, %s57
    %s77 = sphi 0, %s77
    %s79 = sphi 0, %s77
    %s80 = sphi 0, %s79
    %s94 = sphi 0, %s80
    %s98 = sphi 0, %s98
    %s100 = sphi 0, %s98
    %s101 = sphi 0, %s100
    %s115 = sphi 0, %s101
    %s123 = sphi 0, %s125
    %s126 = sphi 0, %s123
    %s127 = sphi 0, %s126
    %s143 = sphi 0, %s127
  $region4: #{liver_cnn_forward.4} parent=0 // loop_header_branch
    %12 = sbr.rel (%p10) target = $region8
  $region5: #{liver_cnn_forward.4} parent=0 // loop_body
    %s14 = ssub.s32 %s9, 1
    %s15 = ssub.s32 %s9, 2
    %s28 = sadd.s32 1, %s19
    %p29 = scmp.ge.s32.totalorder %s28, 3
    %s30 = scalar_select %p29, 0, %s28
    %s31 = sadd.s32 1, %s18
    %s32 = scalar_select %p29, %s31, %s18
    %p33 = scmp.ge.s32.totalorder %s32, 2
    %s34 = scalar_select %p33, 0, %s32
    %s35 = sadd.s32 1, %s17
    %s36 = scalar_select %p33, %s35, %s17
    %p37 = scmp.ge.s32.totalorder %s36, 4
    %s38 = scalar_select %p37, 0, %s36
    %s39 = sadd.s32 1, %s16
    %s40 = scalar_select %p37, %s39, %s16
    %p41 = scmp.ge.s32.totalorder %s40, 2
    %s42 = scalar_select %p41, 0, %s40
    %s43 = smul.u32 %s17, 2
    %s44 = sadd.s32 %s43, %s18
    %s45 = sadd.s32 %s44, %s19
    %s46 = smul.u32 %s38, 2
    %s47 = sadd.s32 %s46, %s34
    %s48 = sadd.s32 %s47, %s30
    %s49 = ssub.s32 %s16, %s42
    %s50 = ssub.s32 %s45, %s48
    %s51 = sor.u32 %s49, %s50
    %p52 = scmp.eq.s32.totalorder %s51, 0
    %s54 = sadd.s32 %s53, 1
    %s55 = scalar_select %p52, %s53, %s54
    %p58 = pneg %p52
    %p59 = scmp.eq.s32.totalorder %s9, 47
    %p60 = por %p58, %p59
    %p61 = scmp.ne.s32.totalorder %s53, %s56
    %p62 = scmp.eq.s32.totalorder %s9, 0
    %p63 = por %p61, %p62
    %p64 = scmp.ne.s32.totalorder %s53, %s56
    %p65 = scmp.eq.s32.totalorder %s14, 47
    %p66 = por %p64, %p65
    %p67 = scmp.ne.s32.totalorder %s56, %s57
    %p68 = scmp.eq.s32.totalorder %s14, 0
    %p69 = por %p67, %p68
    %p70 = scmp.ne.s32.totalorder %s56, %s57
    %p71 = scmp.eq.s32.totalorder %s15, 47
    %p72 = por %p70, %p71
    %p74 = scmp.ne.s32.totalorder %s57, %s73
    %p75 = scmp.eq.s32.totalorder %s15, 0
    %p76 = por %p74, %p75
    %s78 = sadd.s32 %s77, 1
    %p81 = scmp.eq.s32.totalorder %s9, 47
    %p82 = scmp.ne.s32.totalorder %s77, %s79
    %p83 = scmp.eq.s32.totalorder %s9, 0
    %p84 = por %p82, %p83
    %p85 = scmp.ne.s32.totalorder %s77, %s79
    %p86 = scmp.eq.s32.totalorder %s14, 47
    %p87 = por %p85, %p86
    %p88 = scmp.ne.s32.totalorder %s79, %s80
    %p89 = scmp.eq.s32.totalorder %s14, 0
    %p90 = por %p88, %p89
    %p91 = scmp.ne.s32.totalorder %s79, %s80
    %p92 = scmp.eq.s32.totalorder %s15, 47
    %p93 = por %p91, %p92
    %p95 = scmp.ne.s32.totalorder %s80, %s94
    %p96 = scmp.eq.s32.totalorder %s15, 0
    %p97 = por %p95, %p96
    %s99 = sadd.s32 %s98, 1
    %p102 = scmp.eq.s32.totalorder %s9, 47
    %p103 = scmp.ne.s32.totalorder %s98, %s100
    %p104 = scmp.eq.s32.totalorder %s9, 0
    %p105 = por %p103, %p104
    %p106 = scmp.ne.s32.totalorder %s98, %s100
    %p107 = scmp.eq.s32.totalorder %s14, 47
    %p108 = por %p106, %p107
    %p109 = scmp.ne.s32.totalorder %s100, %s101
    %p110 = scmp.eq.s32.totalorder %s14, 0
    %p111 = por %p109, %p110
    %p112 = scmp.ne.s32.totalorder %s100, %s101
    %p113 = scmp.eq.s32.totalorder %s15, 47
    %p114 = por %p112, %p113
    %p116 = scmp.ne.s32.totalorder %s101, %s115
    %p117 = scmp.eq.s32.totalorder %s15, 0
    %p118 = por %p116, %p117
    %s119 = ssub.s32 %s16, %s42
    %s120 = ssub.s32 %s17, %s38
    %s121 = sor.u32 %s119, %s120
    %p122 = scmp.eq.s32.totalorder %s121, 0
    %s124 = sadd.s32 %s123, 1
    %s125 = scalar_select %p122, %s123, %s124
    %p128 = pneg %p122
    %p129 = scmp.eq.s32.totalorder %s9, 47
    %p130 = por %p128, %p129
    %p131 = scmp.ne.s32.totalorder %s123, %s126
    %p132 = scmp.eq.s32.totalorder %s9, 0
    %p133 = por %p131, %p132
    %p134 = scmp.ne.s32.totalorder %s123, %s126
    %p135 = scmp.eq.s32.totalorder %s14, 47
    %p136 = por %p134, %p135
    %p137 = scmp.ne.s32.totalorder %s126, %s127
    %p138 = scmp.eq.s32.totalorder %s14, 0
    %p139 = por %p137, %p138
    %p140 = scmp.ne.s32.totalorder %s126, %s127
    %p141 = scmp.eq.s32.totalorder %s15, 47
    %p142 = por %p140, %p141
    %p144 = scmp.ne.s32.totalorder %s127, %s143
    %p145 = scmp.eq.s32.totalorder %s15, 0
    %p146 = por %p144, %p145
    %p147 = scmp.le.s32.totalorder 1, %s9
    %p148 = scmp.lt.s32.totalorder %s9, 49
    %p149 = pnand %p147, %p148
    %p150 = pneg %p149
    // Predicated region
    $region9: #{liver_cnn_forward.4} parent=5 // pred_check
      _
    $region10: #{liver_cnn_forward.4} parent=5 // pred_check_branch
      %152 = sbr.rel (%p149) target = $region12
    $region11: #{liver_cnn_forward.4} parent=5 // pred_region
      %s153 = ssub.s32 %s9, 1
      // Predicated region
      $region13: #{liver_cnn_forward.4} parent=11 // pred_check
        %p154 = pneg %p90
      $region14: #{liver_cnn_forward.4} parent=11 // pred_check_branch
        %156 = sbr.rel (%p154) target = $region16
      $region15: #{liver_cnn_forward.4} parent=11 // pred_region
        _
      $region16: #{liver_cnn_forward.4} parent=11 // pred_fallthru
        _
      // Predicated region
      $region17: #{liver_cnn_forward.4} parent=11 // pred_check
        %p157 = pneg %p111
      $region18: #{liver_cnn_forward.4} parent=11 // pred_check_branch
        %159 = sbr.rel (%p157) target = $region20
      $region19: #{liver_cnn_forward.4} parent=11 // pred_region
        _
      $region20: #{liver_cnn_forward.4} parent=11 // pred_fallthru
        _
    $region12: #{liver_cnn_forward.4} parent=5 // pred_fallthru
      _
    %p160 = scmp.lt.s32.totalorder %s9, 48
    // Predicated region
    $region21: #{liver_cnn_forward.4} parent=5 // pred_check
      %p161 = pneg %p160
    $region22: #{liver_cnn_forward.4} parent=5 // pred_check_branch
      %163 = sbr.rel (%p161) target = $region24
    $region23: #{liver_cnn_forward.4} parent=5 // pred_region
      // Predicated region
      $region25: #{liver_cnn_forward.4} parent=23 // pred_check
        %p164 = pneg %p63
      $region26: #{liver_cnn_forward.4} parent=23 // pred_check_branch
        %166 = sbr.rel (%p164) target = $region28
      $region27: #{liver_cnn_forward.4} parent=23 // pred_region
        %s167 = smul.u32 %s17, 2
        %s168 = sadd.s32 %s167, %s18
        %s169 = sadd.s32 %s168, %s19
        %p170 = scmp.lt.s32.totalorder %s16, 1
        %s171 = scalar_select %p170, %s16, 1
        %p172 = scmp.lt.s32.totalorder %s169, 9
        %s173 = scalar_select %p172, %s169, 9
        %s174 = smul.addr %s173, 2
        %s175 = smul.addr %s171, 20
        %s176 = sadd.s32 %s174, %s175
        %s177 = smul.addr %s176, 4
        %s178 = scalar_lea.vmem %s0, %s177
        %s179 = smul.u32 %s17, 2
        %s180 = sadd.s32 %s179, %s18
        %s181 = sadd.s32 %s180, %s19
      $region28: #{liver_cnn_forward.4} parent=23 // pred_fallthru
        _
    $region24: #{liver_cnn_forward.4} parent=5 // pred_fallthru
      _
    %p182 = scmp.le.s32.totalorder 1, %s9
    %p183 = scmp.lt.s32.totalorder %s9, 49
    %p184 = pnand %p182, %p183
    %p185 = pneg %p184
    // Predicated region
    $region29: #{liver_cnn_forward.4} parent=5 // pred_check
      _
    $region30: #{liver_cnn_forward.4} parent=5 // pred_check_branch
      %187 = sbr.rel (%p184) target = $region32
    $region31: #{liver_cnn_forward.4} parent=5 // pred_region
      %s188 = ssub.s32 %s9, 1
      %s189 = smul.u32 %s21, 2
      %s190 = sadd.s32 %s189, %s22
      %s191 = sadd.s32 %s190, %s23
      %p192 = scmp.lt.s32.totalorder %s20, 1
      %s193 = scalar_select %p192, %s20, 1
      %p194 = scmp.lt.s32.totalorder %s191, 9
      %s195 = scalar_select %p194, %s191, 9
      %s196 = smul.addr %s195, 2
      %s197 = smul.addr %s193, 20
      %s198 = sadd.s32 %s196, %s197
      %s199 = smul.addr %s198, 4
      %s200 = scalar_lea.vmem %s0, %s199
      %p201 = pneg %p69
      %p202 = pneg %p66
      %p203 = pneg %p90
      %p204 = pneg %p87
      %p205 = pneg %p111
      %p206 = pneg %p108
      %p207 = pneg %p139
      %p208 = pneg %p136
      %p209 = scmp.lt.s32.totalorder %s20, 1
      %s210 = scalar_select %p209, %s20, 1
      %p211 = scmp.lt.s32.totalorder %s21, 3
      %s212 = scalar_select %p211, %s21, 3
      %s213 = smul.addr %s210, 4
      %s214 = sadd.s32 %s212, %s213
      %s215 = smul.addr %s214, 2
      %s216 = scalar_lea.vmem %s3, %s215
      %s217 = smul.u32 %s21, 2
      %s218 = sadd.s32 %s217, %s22
      %s219 = sadd.s32 %s218, %s23
      %p220 = scmp.lt.s32.totalorder %s20, 1
      %s221 = scalar_select %p220, %s20, 1
      %p222 = scmp.lt.s32.totalorder %s219, 9
      %s223 = scalar_select %p222, %s219, 9
      %s224 = smul.addr %s223, 2
      %s225 = smul.addr %s221, 20
      %s226 = sadd.s32 %s224, %s225
      %s227 = smul.addr %s226, 4
      %s228 = scalar_lea.vmem %s0, %s227
      %s229 = smul.u32 %s21, 2
      %s230 = sadd.s32 %s229, %s22
      %s231 = sadd.s32 %s230, %s23
      %p232 = scmp.lt.s32.totalorder %s20, 1
      %s233 = scalar_select %p232, %s20, 1
      %p234 = scmp.lt.s32.totalorder %s21, 3
      %s235 = scalar_select %p234, %s21, 3
      %s236 = smul.addr %s233, 4
      %s237 = sadd.s32 %s235, %s236
      %s238 = smul.addr %s237, 2
      %s239 = scalar_lea.vmem %s3, %s238
      %p241 = scmp.eq.s32.totalorder %s23, 0
      // Predicated region
      $region33: #{liver_cnn_forward.4} parent=31 // pred_check
        %p242 = pneg %p241
      $region34: #{liver_cnn_forward.4} parent=31 // pred_check_branch
        %244 = sbr.rel (%p242) target = $region36
      $region35: #{liver_cnn_forward.4} parent=31 // pred_region
        %245 = vst [vmem:[#allocation2] sm:$0xff] 0.0
      $region36: #{liver_cnn_forward.4} parent=31 // pred_fallthru
        _
      %v246 = vld [vmem:[#allocation2] sm:$0xff]
      %v247 = vld [vmem:[%s228] sm:$0xf]
      %s248 = smul.u32 %s23, 3
      %s249 = smul.u32 %s248, 12
      %s250 = smul.addr %s249, 4
      %s251 = scalar_lea.vmem %s1, %s250
      %v252 = vld [vmem:[%s251] sm:$0xf]
      %v253 = vld [vmem:[%s251 + $0x4] sm:$0xf]
      %v254 = vld [vmem:[%s251 + $0x8] sm:$0xf]
      %v255 = vld [vmem:[%s251 + $0xc] sm:$0xf]
      %v256 = vld [vmem:[%s251 + $0x10] sm:$0xf]
      %v257 = vld [vmem:[%s251 + $0x14] sm:$0xf]
      %v258 = vld [vmem:[%s251 + $0x18] sm:$0xf]
      %v259 = vld [vmem:[%s251 + $0x1c] sm:$0xf]
      %v260 = vld [vmem:[%s251 + $0x20] sm:$0xf]
      %v261 = vld [vmem:[%s251 + $0x24] sm:$0xf]
      %v262 = vld [vmem:[%s251 + $0x28] sm:$0xf]
      %v263 = vld [vmem:[%s251 + $0x2c] sm:$0xf]
      %v276 = vunpack.c.l.b16 %v252
      %v277 = vunpack.c.l.b16 %v253
      %v278 = vunpack.c.l.b16 %v254
      %v279 = vunpack.c.l.b16 %v255
      %v280 = vunpack.c.l.b16 %v256
      %v281 = vunpack.c.l.b16 %v257
      %v282 = vunpack.c.l.b16 %v258
      %v283 = vunpack.c.l.b16 %v259
      %v284 = vunpack.c.l.b16 %v260
      %v285 = vunpack.c.l.b16 %v261
      %v286 = vunpack.c.l.b16 %v262
      %v287 = vunpack.c.l.b16 %v263
      %v288 = vpack.c.b16 %v277, %v276
      %v289 = vpack.c.b16 %v279, %v278
      %v290 = vpack.c.b16 %v281, %v280
      %v291 = vpack.c.b16 %v283, %v282
      %v292 = vpack.c.b16 %v285, %v284
      %v293 = vpack.c.b16 %v287, %v286
      %vm300 = vcmask 785408
      %v302 = vsel %vm300, %v247, 0
      %304 = vmatprep.subr.bf16.mxu0 0
      %305 = vmatpush1.bf16.msra.mxu0 %v288
      %306 = vmatprep.subr.bf16.mxu0 0
      %307 = vmatpush1.bf16.msra.mxu0 %v289
      %308 = vmatprep.subr.bf16.mxu0 0
      %309 = vmatpush1.bf16.msra.mxu0 %v290
      %310 = vmatprep.subr.bf16.mxu0 0
      %311 = vmatpush1.bf16.msra.mxu0 %v291
      %312 = vmatprep.subr.bf16.mxu0 0
      %313 = vmatpush1.bf16.msra.mxu0 %v292
      %314 = vmatprep.subr.bf16.mxu0 0
      %315 = vmatpush1.bf16.msra.mxu0 %v293
      %316 = vmatprep.subr.bf16.mxu0 0
      %317 = vmatpush1.bf16.msra.mxu0 0
      %318 = vmatprep.subr.bf16.mxu0 0
      %319 = vmatpush1.bf16.msra.mxu0 0
      %320 = vmatprep.subr.bf16.mxu0 0
      %321 = vmatpush1.bf16.msra.mxu0 0
      %322 = vmatprep.subr.bf16.mxu0 0
      %323 = vmatpush1.bf16.msra.mxu0 0
      %324 = vmatprep.subr.bf16.mxu0 0
      %325 = vmatpush1.bf16.msra.mxu0 0
      %326 = vmatprep.subr.bf16.mxu0 0
      %327 = vmatpush1.bf16.msra.mxu0 0
      %328 = vmatprep.subr.bf16.mxu0 0
      %329 = vmatpush1.bf16.msra.mxu0 0
      %330 = vmatprep.subr.bf16.mxu0 0
      %331 = vmatpush1.bf16.msra.mxu0 0
      %332 = vmatprep.subr.bf16.mxu0 0
      %333 = vmatpush1.bf16.msra.mxu0 0
      %334 = vmatprep.subr.bf16.mxu0 0
      %335 = vmatpush1.bf16.msra.mxu0 0
      %336 = vmatprep.mubr.bf16.mxu0 0
      %337 = vmatmul.mubr.bf16.gmra.mrb[0].mxu0 %v302
      %v338 = vpop.f32.mrb[0].mxu0
      %v339 = vadd.f32 0.0, %v338
      %v340 = vpop.f32.mrb[0].mxu0
      %v341 = vpop.f32.mrb[0].mxu0
      %v342 = vpop.f32.mrb[0].mxu0
      %343 = vdwg.mxu0
      %v344 = vadd.f32 %v246, %v339
      %v345 = vld [vmem:[%s228] sm:$0xf]
      %v346 = vld [vmem:[%s228 + $0x4] sm:$0x1]
      %s347 = sadd.s32 %s248, 1
      %s348 = smul.u32 %s347, 12
      %s349 = smul.addr %s348, 4
      %s350 = scalar_lea.vmem %s1, %s349
      %v351 = vld [vmem:[%s350] sm:$0xf]
      %v352 = vld [vmem:[%s350 + $0x4] sm:$0xf]
      %v353 = vld [vmem:[%s350 + $0x8] sm:$0xf]
      %v354 = vld [vmem:[%s350 + $0xc] sm:$0xf]
      %v355 = vld [vmem:[%s350 + $0x10] sm:$0xf]
      %v356 = vld [vmem:[%s350 + $0x14] sm:$0xf]
      %v357 = vld [vmem:[%s350 + $0x18] sm:$0xf]
      %v358 = vld [vmem:[%s350 + $0x1c] sm:$0xf]
      %v359 = vld [vmem:[%s350 + $0x20] sm:$0xf]
      %v360 = vld [vmem:[%s350 + $0x24] sm:$0xf]
      %v361 = vld [vmem:[%s350 + $0x28] sm:$0xf]
      %v362 = vld [vmem:[%s350 + $0x2c] sm:$0xf]
      %v365 = vunpack.c.l.b16 %v345
      %v366 = vunpack.c.l.b16 %v346
      %v367 = vpack.c.b16 %v366, %v365
      %v369 = vshrl.u32 %v367, 16
      %v371 = vshll.u32 %v367, 16
      %v373 = vrot.slane %v371, 1
      %v374 = vor.u32 %v369, %v373
      %v387 = vunpack.c.l.b16 %v351
      %v388 = vunpack.c.l.b16 %v352
      %v389 = vunpack.c.l.b16 %v353
      %v390 = vunpack.c.l.b16 %v354
      %v391 = vunpack.c.l.b16 %v355
      %v392 = vunpack.c.l.b16 %v356
      %v393 = vunpack.c.l.b16 %v357
      %v394 = vunpack.c.l.b16 %v358
      %v395 = vunpack.c.l.b16 %v359
      %v396 = vunpack.c.l.b16 %v360
      %v397 = vunpack.c.l.b16 %v361
      %v398 = vunpack.c.l.b16 %v362
      %v399 = vpack.c.b16 %v388, %v387
      %v400 = vpack.c.b16 %v390, %v389
      %v401 = vpack.c.b16 %v392, %v391
      %v402 = vpack.c.b16 %v394, %v393
      %v403 = vpack.c.b16 %v396, %v395
      %v404 = vpack.c.b16 %v398, %v397
      %v412 = vsel %vm300, %v374, 0
      %414 = vmatprep.subr.bf16.mxu0 0
      %415 = vmatpush1.bf16.msra.mxu0 %v399
      %416 = vmatprep.subr.bf16.mxu0 0
      %417 = vmatpush1.bf16.msra.mxu0 %v400
      %418 = vmatprep.subr.bf16.mxu0 0
      %419 = vmatpush1.bf16.msra.mxu0 %v401
      %420 = vmatprep.subr.bf16.mxu0 0
      %421 = vmatpush1.bf16.msra.mxu0 %v402
      %422 = vmatprep.subr.bf16.mxu0 0
      %423 = vmatpush1.bf16.msra.mxu0 %v403
      %424 = vmatprep.subr.bf16.mxu0 0
      %425 = vmatpush1.bf16.msra.mxu0 %v404
      %426 = vmatprep.subr.bf16.mxu0 0
      %427 = vmatpush1.bf16.msra.mxu0 0
      %428 = vmatprep.subr.bf16.mxu0 0
      %429 = vmatpush1.bf16.msra.mxu0 0
      %430 = vmatprep.subr.bf16.mxu0 0
      %431 = vmatpush1.bf16.msra.mxu0 0
      %432 = vmatprep.subr.bf16.mxu0 0
      %433 = vmatpush1.bf16.msra.mxu0 0
      %434 = vmatprep.subr.bf16.mxu0 0
      %435 = vmatpush1.bf16.msra.mxu0 0
      %436 = vmatprep.subr.bf16.mxu0 0
      %437 = vmatpush1.bf16.msra.mxu0 0
      %438 = vmatprep.subr.bf16.mxu0 0
      %439 = vmatpush1.bf16.msra.mxu0 0
      %440 = vmatprep.subr.bf16.mxu0 0
      %441 = vmatpush1.bf16.msra.mxu0 0
      %442 = vmatprep.subr.bf16.mxu0 0
      %443 = vmatpush1.bf16.msra.mxu0 0
      %444 = vmatprep.subr.bf16.mxu0 0
      %445 = vmatpush1.bf16.msra.mxu0 0
      %446 = vmatprep.mubr.bf16.mxu0 0
      %447 = vmatmul.mubr.bf16.gmra.mrb[0].mxu0 %v412
      %v448 = vpop.f32.mrb[0].mxu0
      %v449 = vadd.f32 0.0, %v448
      %v450 = vpop.f32.mrb[0].mxu0
      %v451 = vpop.f32.mrb[0].mxu0
      %v452 = vpop.f32.mrb[0].mxu0
      %453 = vdwg.mxu0
      %v454 = vadd.f32 %v344, %v449
      %v455 = vld [vmem:[%s228] sm:$0xe]
      %s456 = sadd.s32 %s248, 2
      %s457 = smul.u32 %s456, 12
      %s458 = smul.addr %s457, 4
      %s459 = scalar_lea.vmem %s1, %s458
      %v460 = vld [vmem:[%s459] sm:$0xf]
      %v461 = vld [vmem:[%s459 + $0x4] sm:$0xf]
      %v462 = vld [vmem:[%s459 + $0x8] sm:$0xf]
      %v463 = vld [vmem:[%s459 + $0xc] sm:$0xf]
      %v464 = vld [vmem:[%s459 + $0x10] sm:$0xf]
      %v465 = vld [vmem:[%s459 + $0x14] sm:$0xf]
      %v466 = vld [vmem:[%s459 + $0x18] sm:$0xf]
      %v467 = vld [vmem:[%s459 + $0x1c] sm:$0xf]
      %v468 = vld [vmem:[%s459 + $0x20] sm:$0xf]
      %v469 = vld [vmem:[%s459 + $0x24] sm:$0xf]
      %v470 = vld [vmem:[%s459 + $0x28] sm:$0xf]
      %v471 = vld [vmem:[%s459 + $0x2c] sm:$0xf]
      %v473 = vunpack.c.l.b16 %v455
      %v474 = vpack.c.b16 %v366, %v473
      %v475 = vrot.slane %v474, 1
      %v488 = vunpack.c.l.b16 %v460
      %v489 = vunpack.c.l.b16 %v461
      %v490 = vunpack.c.l.b16 %v462
      %v491 = vunpack.c.l.b16 %v463
      %v492 = vunpack.c.l.b16 %v464
      %v493 = vunpack.c.l.b16 %v465
      %v494 = vunpack.c.l.b16 %v466
      %v495 = vunpack.c.l.b16 %v467
      %v496 = vunpack.c.l.b16 %v468
      %v497 = vunpack.c.l.b16 %v469
      %v498 = vunpack.c.l.b16 %v470
      %v499 = vunpack.c.l.b16 %v471
      %v500 = vpack.c.b16 %v489, %v488
      %v501 = vpack.c.b16 %v491, %v490
      %v502 = vpack.c.b16 %v493, %v492
      %v503 = vpack.c.b16 %v495, %v494
      %v504 = vpack.c.b16 %v497, %v496
      %v505 = vpack.c.b16 %v499, %v498
      %v513 = vsel %vm300, %v475, 0
      %515 = vmatprep.subr.bf16.mxu0 0
      %516 = vmatpush1.bf16.msra.mxu0 %v500
      %517 = vmatprep.subr.bf16.mxu0 0
      %518 = vmatpush1.bf16.msra.mxu0 %v501
      %519 = vmatprep.subr.bf16.mxu0 0
      %520 = vmatpush1.bf16.msra.mxu0 %v502
      %521 = vmatprep.subr.bf16.mxu0 0
      %522 = vmatpush1.bf16.msra.mxu0 %v503
      %523 = vmatprep.subr.bf16.mxu0 0
      %524 = vmatpush1.bf16.msra.mxu0 %v504
      %525 = vmatprep.subr.bf16.mxu0 0
      %526 = vmatpush1.bf16.msra.mxu0 %v505
      %527 = vmatprep.subr.bf16.mxu0 0
      %528 = vmatpush1.bf16.msra.mxu0 0
      %529 = vmatprep.subr.bf16.mxu0 0
      %530 = vmatpush1.bf16.msra.mxu0 0
      %531 = vmatprep.subr.bf16.mxu0 0
      %532 = vmatpush1.bf16.msra.mxu0 0
      %533 = vmatprep.subr.bf16.mxu0 0
      %534 = vmatpush1.bf16.msra.mxu0 0
      %535 = vmatprep.subr.bf16.mxu0 0
      %536 = vmatpush1.bf16.msra.mxu0 0
      %537 = vmatprep.subr.bf16.mxu0 0
      %538 = vmatpush1.bf16.msra.mxu0 0
      %539 = vmatprep.subr.bf16.mxu0 0
      %540 = vmatpush1.bf16.msra.mxu0 0
      %541 = vmatprep.subr.bf16.mxu0 0
      %542 = vmatpush1.bf16.msra.mxu0 0
      %543 = vmatprep.subr.bf16.mxu0 0
      %544 = vmatpush1.bf16.msra.mxu0 0
      %545 = vmatprep.subr.bf16.mxu0 0
      %546 = vmatpush1.bf16.msra.mxu0 0
      %547 = vmatprep.mubr.bf16.mxu0 0
      %548 = vmatmul.mubr.bf16.gmra.mrb[0].mxu0 %v513
      %v549 = vpop.f32.mrb[0].mxu0
      %v550 = vadd.f32 0.0, %v549
      %v551 = vpop.f32.mrb[0].mxu0
      %v552 = vpop.f32.mrb[0].mxu0
      %v553 = vpop.f32.mrb[0].mxu0
      %554 = vdwg.mxu0
      %v555 = vadd.f32 %v454, %v550
      %556 = vst [vmem:[#allocation2] sm:$0xff] %v555
      %p557 = scmp.eq.s32.totalorder %s23, 2
      // Predicated region
      $region37: #{liver_cnn_forward.4} parent=31 // pred_check
        %p558 = pneg %p557
      $region38: #{liver_cnn_forward.4} parent=31 // pred_check_branch
        %560 = sbr.rel (%p558) target = $region40
      $region39: #{liver_cnn_forward.4} parent=31 // pred_region
        %v561 = vld [vmem:[#allocation2] sm:$0xff]
        %563 = vrot.lane.b32.xlu0 %v561, 64
        %v564 = vpop.permute.xlu0 %563
        %v566 = vmax.f32 %v561, %v564
        %v568 = vcombine.high %v566, %v566
        %v570 = vunpack.c.l.s4 1983009808
        %v571 = vunpack.c.0.s8 %v570
        %v572 = vlaneseq
        %v573 = vshrl.u32 %v572, 7
        %v574 = vsub.s32 %v571, %v573
        %v575 = vrot.slane %v566, %v574
        %v577 = vunpack.c.l.s4 1983009808
        %v578 = vunpack.c.0.s8 %v577
        %v579 = vlaneseq
        %v580 = vshrl.u32 %v579, 7
        %v581 = vsub.s32 %v578, %v580
        %v582 = vrot.slane %v568, %v581
        %v583 = vcombine.high %v575, %v575
        %v584 = vcombine.high %v582, %v582
        %v589 = vrot.slane %v575, 7
        %v590 = vrot.slane %v589, 2
        %v591 = vrot.slane %v583, 7
        %v592 = vrot.slane %v591, 2
        %v593 = vrot.slane %v582, 7
        %v594 = vrot.slane %v593, 2
        %v595 = vrot.slane %v584, 7
        %v596 = vrot.slane %v595, 2
        %v601 = vmax.f32 %v575, %v590
        %v602 = vmax.f32 %v583, %v592
        %v603 = vmax.f32 %v582, %v594
        %v604 = vmax.f32 %v584, %v596
        %p605 = scmp.eq.s32.totalorder %s22, 0
        // Predicated region
        $region41: #{liver_cnn_forward.4} parent=39 // pred_check
          %p606 = pneg %p605
        $region42: #{liver_cnn_forward.4} parent=39 // pred_check_branch
          %608 = sbr.rel (%p606) target = $region44
        $region43: #{liver_cnn_forward.4} parent=39 // pred_region
          %v613 = vlaneseq
          %v614 = vshrl.u32 %v613, 7
          %v615 = vsub.s32 0, %v614
          %v616 = vrot.slane %v601, %v615
          %v617 = vlaneseq
          %v618 = vshrl.u32 %v617, 7
          %v619 = vsub.s32 0, %v618
          %v620 = vrot.slane %v602, %v619
          %v621 = vlaneseq
          %v622 = vshrl.u32 %v621, 7
          %v623 = vsub.s32 0, %v622
          %v624 = vrot.slane %v603, %v623
          %v625 = vlaneseq
          %v626 = vshrl.u32 %v625, 7
          %v627 = vsub.s32 0, %v626
          %v628 = vrot.slane %v604, %v627
          %vm629 = vcmask 1041409
          %v630 = vsel %vm629, %v620, %v616
          %vm631 = vcmask 1042434
          %v632 = vsel %vm631, %v624, %v630
          %vm633 = vcmask 1043459
          %v634 = vsel %vm633, %v628, %v632
          %vm636 = vcmask 519168
          %637 = vst.msk [vmem:[#allocation3] sm:$0xf] %vm636, %v634
        $region44: #{liver_cnn_forward.4} parent=39 // pred_fallthru
          _
        %p638 = scmp.eq.s32.totalorder %s22, 1
        // Predicated region
        $region45: #{liver_cnn_forward.4} parent=39 // pred_check
          %p639 = pneg %p638
        $region46: #{liver_cnn_forward.4} parent=39 // pred_check_branch
          %641 = sbr.rel (%p639) target = $region48
        $region47: #{liver_cnn_forward.4} parent=39 // pred_region
          %v642 = vld [vmem:[#allocation3] sm:$0xf]
          %v647 = vlaneseq
          %v648 = vshrl.u32 %v647, 7
          %v649 = vsub.s32 0, %v648
          %v650 = vrot.slane %v601, %v649
          %v651 = vlaneseq
          %v652 = vshrl.u32 %v651, 7
          %v653 = vsub.s32 0, %v652
          %v654 = vrot.slane %v602, %v653
          %v655 = vlaneseq
          %v656 = vshrl.u32 %v655, 7
          %v657 = vsub.s32 0, %v656
          %v658 = vrot.slane %v603, %v657
          %v659 = vlaneseq
          %v660 = vshrl.u32 %v659, 7
          %v661 = vsub.s32 0, %v660
          %v662 = vrot.slane %v604, %v661
          %vm663 = vcmask 1041409
          %v664 = vsel %vm663, %v654, %v650
          %vm665 = vcmask 1042434
          %v666 = vsel %vm665, %v658, %v664
          %vm667 = vcmask 1043459
          %v668 = vsel %vm667, %v662, %v666
          %v670 = vmax.f32 %v642, %v668
          %v671 = vld [vmem:[%s2] sm:$0x1]
          %v673 = vlaneseq
          %v674 = vshrl.u32 %v673, 7
          %v675 = vsub.s32 0, %v674
          %v676 = vrot.slane %v671, %v675
          %v678 = vadd.f32 %v670, %v676
          %v679 = vmax.f32 %v678, 0.0
          %v680 = vpack.c.bf16 %v679, %v679
          %vm681 = vcmask 517120
          %682 = vst.msk [vmem:[%s239] sm:$0x3] %vm681, %v680
        $region48: #{liver_cnn_forward.4} parent=39 // pred_fallthru
          _
      $region40: #{liver_cnn_forward.4} parent=31 // pred_fallthru
        _
      %p683 = scmp.lt.s32.totalorder %s20, 1
      %s684 = scalar_select %p683, %s20, 1
      %p685 = scmp.lt.s32.totalorder %s21, 3
      %s686 = scalar_select %p685, %s21, 3
      %s687 = smul.addr %s684, 4
      %s688 = sadd.s32 %s686, %s687
      %s689 = smul.addr %s688, 2
      %s690 = scalar_lea.vmem %s3, %s689
      // Predicated region
      $region49: #{liver_cnn_forward.4} parent=31 // pred_check
        %p691 = pneg %p136
      $region50: #{liver_cnn_forward.4} parent=31 // pred_check_branch
        %693 = sbr.rel (%p691) target = $region52
      $region51: #{liver_cnn_forward.4} parent=31 // pred_region
        _
      $region52: #{liver_cnn_forward.4} parent=31 // pred_fallthru
        _
    $region32: #{liver_cnn_forward.4} parent=5 // pred_fallthru
      _
    %p694 = scmp.le.s32.totalorder 2, %s9
    // Predicated region
    $region53: #{liver_cnn_forward.4} parent=5 // pred_check
      %p695 = pneg %p694
    $region54: #{liver_cnn_forward.4} parent=5 // pred_check_branch
      %697 = sbr.rel (%p695) target = $region56
    $region55: #{liver_cnn_forward.4} parent=5 // pred_region
      %s698 = ssub.s32 %s9, 2
      // Predicated region
      $region57: #{liver_cnn_forward.4} parent=55 // pred_check
        %p699 = pneg %p142
      $region58: #{liver_cnn_forward.4} parent=55 // pred_check_branch
        %701 = sbr.rel (%p699) target = $region60
      $region59: #{liver_cnn_forward.4} parent=55 // pred_region
        %p702 = scmp.lt.s32.totalorder %s24, 1
        %s703 = scalar_select %p702, %s24, 1
        %p704 = scmp.lt.s32.totalorder %s25, 3
        %s705 = scalar_select %p704, %s25, 3
        %s706 = smul.addr %s703, 4
        %s707 = sadd.s32 %s705, %s706
        %s708 = smul.addr %s707, 2
        %s709 = scalar_lea.vmem %s3, %s708
      $region60: #{liver_cnn_forward.4} parent=55 // pred_fallthru
        _
    $region56: #{liver_cnn_forward.4} parent=5 // pred_fallthru
      _
  $region6: #{liver_cnn_forward.4} parent=0 // loop_footer
    %s13 = sadd.s32 1, %s9
  $region7: #{liver_cnn_forward.4} parent=0 // loop_footer_branch
    %8 = sbr.rel target = $region3
  $region8: #{liver_cnn_forward.4} parent=0 // loop_exit
    _

// kernel: liver_cnn_forward.5
$region0: #{liver_cnn_forward.5}
  #allocation0 [shape = 'u32[]', space=smem, size = 0x4, offset = 0x4, fixed_abs, tag = 'smem constant byte address 0x4 - core index']
  #allocation1 [shape = 'u32[144,128]{1,0:T(1,128)}', space=vmem, size = 0x12000, scoped, tag = 'internal scratch']
  #allocation2 [shape = 'f32[2,64]{1,0:T(2,128)}', space=vmem, size = 0x400, scoped, tag = 'scratch operand']
  %s0 = inlined_call_operand.vmem [shape: bf16[2,2,512], index: 0, kind: input, shape index: {}]
  %s1 = inlined_call_operand.vmem [shape: bf16[512,128], index: 1, kind: input, shape index: {}]
  %s2 = inlined_call_operand.vmem [shape: f32[1,64], index: 2, kind: input, shape index: {}]
  %s3 = inlined_call_operand.vmem [shape: bf16[64,128], index: 3, kind: input, shape index: {}]
  %s4 = inlined_call_operand.vmem [shape: f32[1,128], index: 4, kind: input, shape index: {}]
  %s5 = inlined_call_operand.hbm [shape: f32[2,128], index: 5, kind: output, shape index: {}]
  %s6 = sld [smem:[#allocation0]]
  $region38: #{liver_cnn_forward.5} parent=0
    _
  %s8 = ssub.s32 1, %s6
  %s9 = scalar_select 0, %s8, %s6
  $region1: #{liver_cnn_forward.5} parent=0
    #allocation3 [shape = 'u8[1024]{0}', space=vmem, size = 0x400, scoped, tag = 'output window, operand 0, single buffered']
    #allocation4 [shape = 's32[1]{0}', space=sflag, size = 0x4, scoped, tag = 'scoped memory for liver_cnn_forward.5']
    %10 = vsyncpa [#allocation4], 0
    // Predicated region
    $region2: #{liver_cnn_forward.5} parent=1 // pred_check
      _
    $region3: #{liver_cnn_forward.5} parent=1 // pred_check_branch
      %12 = sbr.rel (0) target = $region5
    $region4: #{liver_cnn_forward.5} parent=1 // pred_region
      _
    $region5: #{liver_cnn_forward.5} parent=1 // pred_fallthru
      _
    // Predicated region
    $region6: #{liver_cnn_forward.5} parent=1 // pred_check
      _
    $region7: #{liver_cnn_forward.5} parent=1 // pred_check_branch
      %14 = sbr.rel (0) target = $region9
    $region8: #{liver_cnn_forward.5} parent=1 // pred_region
      _
    $region9: #{liver_cnn_forward.5} parent=1 // pred_fallthru
      _
    // Predicated region
    $region10: #{liver_cnn_forward.5} parent=1 // pred_check
      _
    $region11: #{liver_cnn_forward.5} parent=1 // pred_check_branch
      %16 = sbr.rel (0) target = $region13
    $region12: #{liver_cnn_forward.5} parent=1 // pred_region
      _
    $region13: #{liver_cnn_forward.5} parent=1 // pred_fallthru
      _
    // Predicated region
    $region14: #{liver_cnn_forward.5} parent=1 // pred_check
      _
    $region15: #{liver_cnn_forward.5} parent=1 // pred_check_branch
      %18 = sbr.rel (0) target = $region17
    $region16: #{liver_cnn_forward.5} parent=1 // pred_region
      _
    $region17: #{liver_cnn_forward.5} parent=1 // pred_fallthru
      _
    // Predicated region
    $region18: #{liver_cnn_forward.5} parent=1 // pred_check
      _
    $region19: #{liver_cnn_forward.5} parent=1 // pred_check_branch
      %20 = sbr.rel (0) target = $region21
    $region20: #{liver_cnn_forward.5} parent=1 // pred_region
      _
    $region21: #{liver_cnn_forward.5} parent=1 // pred_fallthru
      _
    %p22 = scmp.eq.s32.totalorder 0, 0
    // Predicated region
    $region22: #{liver_cnn_forward.5} parent=1 // pred_check
      %p23 = pneg %p22
    $region23: #{liver_cnn_forward.5} parent=1 // pred_check_branch
      %25 = sbr.rel (%p23) target = $region25
    $region24: #{liver_cnn_forward.5} parent=1 // pred_region
      %vm26 = vcmask 517120
      %27 = vst.msk [vmem:[#allocation2] sm:$0x3] %vm26, 0.0
    $region25: #{liver_cnn_forward.5} parent=1 // pred_fallthru
      _
    %v28 = vld [vmem:[#allocation2] sm:$0x3]
    %v29 = vld [vmem:[%s0] sm:$0xf]
    %v30 = vld [vmem:[%s0 + $0x4] sm:$0xf]
    %v31 = vld [vmem:[%s1] sm:$0xf]
    %v32 = vld [vmem:[%s1 + $0x4] sm:$0xf]
    %v33 = vld [vmem:[%s1 + $0x8] sm:$0xf]
    %v34 = vld [vmem:[%s1 + $0xc] sm:$0xf]
    %v35 = vld [vmem:[%s1 + $0x10] sm:$0xf]
    %v36 = vld [vmem:[%s1 + $0x14] sm:$0xf]
    %v37 = vld [vmem:[%s1 + $0x18] sm:$0xf]
    %v38 = vld [vmem:[%s1 + $0x1c] sm:$0xf]
    %v39 = vld [vmem:[%s1 + $0x20] sm:$0xf]
    %v40 = vld [vmem:[%s1 + $0x24] sm:$0xf]
    %v41 = vld [vmem:[%s1 + $0x28] sm:$0xf]
    %v42 = vld [vmem:[%s1 + $0x2c] sm:$0xf]
    %v43 = vld [vmem:[%s1 + $0x30] sm:$0xf]
    %v44 = vld [vmem:[%s1 + $0x34] sm:$0xf]
    %v45 = vld [vmem:[%s1 + $0x38] sm:$0xf]
    %v46 = vld [vmem:[%s1 + $0x3c] sm:$0xf]
    %v47 = vld [vmem:[%s1 + $0x40] sm:$0xf]
    %v48 = vld [vmem:[%s1 + $0x44] sm:$0xf]
    %v49 = vld [vmem:[%s1 + $0x48] sm:$0xf]
    %v50 = vld [vmem:[%s1 + $0x4c] sm:$0xf]
    %v51 = vld [vmem:[%s1 + $0x50] sm:$0xf]
    %v52 = vld [vmem:[%s1 + $0x54] sm:$0xf]
    %v53 = vld [vmem:[%s1 + $0x58] sm:$0xf]
    %v54 = vld [vmem:[%s1 + $0x5c] sm:$0xf]
    %v55 = vld [vmem:[%s1 + $0x60] sm:$0xf]
    %v56 = vld [vmem:[%s1 + $0x64] sm:$0xf]
    %v57 = vld [vmem:[%s1 + $0x68] sm:$0xf]
    %v58 = vld [vmem:[%s1 + $0x6c] sm:$0xf]
    %v59 = vld [vmem:[%s1 + $0x70] sm:$0xf]
    %v60 = vld [vmem:[%s1 + $0x74] sm:$0xf]
    %v61 = vld [vmem:[%s1 + $0x78] sm:$0xf]
    %v62 = vld [vmem:[%s1 + $0x7c] sm:$0xf]
    %v63 = vld [vmem:[%s1 + $0x80] sm:$0xf]
    %v64 = vld [vmem:[%s1 + $0x84] sm:$0xf]
    %v65 = vld [vmem:[%s1 + $0x88] sm:$0xf]
    %v66 = vld [vmem:[%s1 + $0x8c] sm:$0xf]
    %v67 = vld [vmem:[%s1 + $0x90] sm:$0xf]
    %v68 = vld [vmem:[%s1 + $0x94] sm:$0xf]
    %v69 = vld [vmem:[%s1 + $0x98] sm:$0xf]
    %v70 = vld [vmem:[%s1 + $0x9c] sm:$0xf]
    %v71 = vld [vmem:[%s1 + $0xa0] sm:$0xf]
    %v72 = vld [vmem:[%s1 + $0xa4] sm:$0xf]
    %v73 = vld [vmem:[%s1 + $0xa8] sm:$0xf]
    %v74 = vld [vmem:[%s1 + $0xac] sm:$0xf]
    %v75 = vld [vmem:[%s1 + $0xb0] sm:$0xf]
    %v76 = vld [vmem:[%s1 + $0xb4] sm:$0xf]
    %v77 = vld [vmem:[%s1 + $0xb8] sm:$0xf]
    %v78 = vld [vmem:[%s1 + $0xbc] sm:$0xf]
    %v79 = vld [vmem:[%s1 + $0xc0] sm:$0xf]
    %v80 = vld [vmem:[%s1 + $0xc4] sm:$0xf]
    %v81 = vld [vmem:[%s1 + $0xc8] sm:$0xf]
    %v82 = vld [vmem:[%s1 + $0xcc] sm:$0xf]
    %v83 = vld [vmem:[%s1 + $0xd0] sm:$0xf]
    %v84 = vld [vmem:[%s1 + $0xd4] sm:$0xf]
    %v85 = vld [vmem:[%s1 + $0xd8] sm:$0xf]
    %v86 = vld [vmem:[%s1 + $0xdc] sm:$0xf]
    %v87 = vld [vmem:[%s1 + $0xe0] sm:$0xf]
    %v88 = vld [vmem:[%s1 + $0xe4] sm:$0xf]
    %v89 = vld [vmem:[%s1 + $0xe8] sm:$0xf]
    %v90 = vld [vmem:[%s1 + $0xec] sm:$0xf]
    %v91 = vld [vmem:[%s1 + $0xf0] sm:$0xf]
    %v92 = vld [vmem:[%s1 + $0xf4] sm:$0xf]
    %v93 = vld [vmem:[%s1 + $0xf8] sm:$0xf]
    %v94 = vld [vmem:[%s1 + $0xfc] sm:$0xf]
    %v98 = vunpack.c.l.s4 1966171168
    %v99 = vunpack.c.0.s8 %v98
    %v100 = vlaneseq
    %v101 = vshrl.u32 %v100, 7
    %v102 = vsub.s32 %v99, %v101
    %v103 = vrot.slane %v29, %v102
    %v104 = vcombine.high %v103, %v103
    %v106 = vunpack.c.l.s4 1966171168
    %v107 = vunpack.c.0.s8 %v106
    %v108 = vlaneseq
    %v109 = vshrl.u32 %v108, 7
    %v110 = vsub.s32 %v107, %v109
    %v111 = vrot.slane %v103, %v110
    %v113 = vunpack.c.l.s4 1966171168
    %v114 = vunpack.c.0.s8 %v113
    %v115 = vlaneseq
    %v116 = vshrl.u32 %v115, 7
    %v117 = vsub.s32 %v114, %v116
    %v118 = vrot.slane %v104, %v117
    %v119 = vcombine.high %v111, %v111
    %v120 = vcombine.high %v118, %v118
    %v122 = vunpack.c.l.s4 1966171168
    %v123 = vunpack.c.0.s8 %v122
    %v124 = vlaneseq
    %v125 = vshrl.u32 %v124, 7
    %v126 = vsub.s32 %v123, %v125
    %v127 = vrot.slane %v30, %v126
    %v128 = vcombine.high %v127, %v127
    %v130 = vunpack.c.l.s4 1966171168
    %v131 = vunpack.c.0.s8 %v130
    %v132 = vlaneseq
    %v133 = vshrl.u32 %v132, 7
    %v134 = vsub.s32 %v131, %v133
    %v135 = vrot.slane %v127, %v134
    %v137 = vunpack.c.l.s4 1966171168
    %v138 = vunpack.c.0.s8 %v137
    %v139 = vlaneseq
    %v140 = vshrl.u32 %v139, 7
    %v141 = vsub.s32 %v138, %v140
    %v142 = vrot.slane %v128, %v141
    %v143 = vcombine.high %v135, %v135
    %v144 = vcombine.high %v142, %v142
    %v145 = vunpack.c.l.b16 %v111
    %v146 = vunpack.c.l.b16 %v118
    %v147 = vunpack.c.l.b16 %v119
    %v148 = vunpack.c.l.b16 %v120
    %v149 = vunpack.c.l.b16 %v135
    %v150 = vunpack.c.l.b16 %v142
    %v151 = vunpack.c.l.b16 %v143
    %v152 = vunpack.c.l.b16 %v144
    %v153 = vrot.slane %v145, 1
    %vm154 = vcmask 1041409
    %v155 = vsel %vm154, %v149, %v153
    %v156 = vrot.slane %v146, 1
    %v157 = vsel %vm154, %v150, %v156
    %v158 = vrot.slane %v147, 1
    %v159 = vsel %vm154, %v151, %v158
    %v160 = vrot.slane %v148, 1
    %v161 = vsel %vm154, %v152, %v160
    %v162 = vpack.c.b16 %v155, %v155
    %v163 = vpack.c.b16 %v157, %v157
    %v164 = vpack.c.b16 %v159, %v159
    %v165 = vpack.c.b16 %v161, %v161
    %v234 = vunpack.c.l.b16 %v31
    %v235 = vunpack.c.l.b16 %v32
    %v236 = vunpack.c.l.b16 %v33
    %v237 = vunpack.c.l.b16 %v34
    %v238 = vunpack.c.l.b16 %v35
    %v239 = vunpack.c.l.b16 %v36
    %v240 = vunpack.c.l.b16 %v37
    %v241 = vunpack.c.l.b16 %v38
    %v242 = vunpack.c.l.b16 %v39
    %v243 = vunpack.c.l.b16 %v40
    %v244 = vunpack.c.l.b16 %v41
    %v245 = vunpack.c.l.b16 %v42
    %v246 = vunpack.c.l.b16 %v43
    %v247 = vunpack.c.l.b16 %v44
    %v248 = vunpack.c.l.b16 %v45
    %v249 = vunpack.c.l.b16 %v46
    %v250 = vunpack.c.l.b16 %v47
    %v251 = vunpack.c.l.b16 %v48
    %v252 = vunpack.c.l.b16 %v49
    %v253 = vunpack.c.l.b16 %v50
    %v254 = vunpack.c.l.b16 %v51
    %v255 = vunpack.c.l.b16 %v52
    %v256 = vunpack.c.l.b16 %v53
    %v257 = vunpack.c.l.b16 %v54
    %v258 = vunpack.c.l.b16 %v55
    %v259 = vunpack.c.l.b16 %v56
    %v260 = vunpack.c.l.b16 %v57
    %v261 = vunpack.c.l.b16 %v58
    %v262 = vunpack.c.l.b16 %v59
    %v263 = vunpack.c.l.b16 %v60
    %v264 = vunpack.c.l.b16 %v61
    %v265 = vunpack.c.l.b16 %v62
    %v266 = vunpack.c.l.b16 %v63
    %v267 = vunpack.c.l.b16 %v64
    %v268 = vunpack.c.l.b16 %v65
    %v269 = vunpack.c.l.b16 %v66
    %v270 = vunpack.c.l.b16 %v67
    %v271 = vunpack.c.l.b16 %v68
    %v272 = vunpack.c.l.b16 %v69
    %v273 = vunpack.c.l.b16 %v70
    %v274 = vunpack.c.l.b16 %v71
    %v275 = vunpack.c.l.b16 %v72
    %v276 = vunpack.c.l.b16 %v73
    %v277 = vunpack.c.l.b16 %v74
    %v278 = vunpack.c.l.b16 %v75
    %v279 = vunpack.c.l.b16 %v76
    %v280 = vunpack.c.l.b16 %v77
    %v281 = vunpack.c.l.b16 %v78
    %v282 = vunpack.c.l.b16 %v79
    %v283 = vunpack.c.l.b16 %v80
    %v284 = vunpack.c.l.b16 %v81
    %v285 = vunpack.c.l.b16 %v82
    %v286 = vunpack.c.l.b16 %v83
    %v287 = vunpack.c.l.b16 %v84
    %v288 = vunpack.c.l.b16 %v85
    %v289 = vunpack.c.l.b16 %v86
    %v290 = vunpack.c.l.b16 %v87
    %v291 = vunpack.c.l.b16 %v88
    %v292 = vunpack.c.l.b16 %v89
    %v293 = vunpack.c.l.b16 %v90
    %v294 = vunpack.c.l.b16 %v91
    %v295 = vunpack.c.l.b16 %v92
    %v296 = vunpack.c.l.b16 %v93
    %v297 = vunpack.c.l.b16 %v94
    %v298 = vpack.c.b16 %v235, %v234
    %v299 = vpack.c.b16 %v237, %v236
    %v300 = vpack.c.b16 %v239, %v238
    %v301 = vpack.c.b16 %v241, %v240
    %v302 = vpack.c.b16 %v243, %v242
    %v303 = vpack.c.b16 %v245, %v244
    %v304 = vpack.c.b16 %v247, %v246
    %v305 = vpack.c.b16 %v249, %v248
    %v306 = vpack.c.b16 %v251, %v250
    %v307 = vpack.c.b16 %v253, %v252
    %v308 = vpack.c.b16 %v255, %v254
    %v309 = vpack.c.b16 %v257, %v256
    %v310 = vpack.c.b16 %v259, %v258
    %v311 = vpack.c.b16 %v261, %v260
    %v312 = vpack.c.b16 %v263, %v262
    %v313 = vpack.c.b16 %v265, %v264
    %v314 = vpack.c.b16 %v267, %v266
    %v315 = vpack.c.b16 %v269, %v268
    %v316 = vpack.c.b16 %v271, %v270
    %v317 = vpack.c.b16 %v273, %v272
    %v318 = vpack.c.b16 %v275, %v274
    %v319 = vpack.c.b16 %v277, %v276
    %v320 = vpack.c.b16 %v279, %v278
    %v321 = vpack.c.b16 %v281, %v280
    %v322 = vpack.c.b16 %v283, %v282
    %v323 = vpack.c.b16 %v285, %v284
    %v324 = vpack.c.b16 %v287, %v286
    %v325 = vpack.c.b16 %v289, %v288
    %v326 = vpack.c.b16 %v291, %v290
    %v327 = vpack.c.b16 %v293, %v292
    %v328 = vpack.c.b16 %v295, %v294
    %v329 = vpack.c.b16 %v297, %v296
    %330 = vrot.lane.b32.xlu0 %v298, 64
    %v331 = vpop.permute.xlu0 %330
    %332 = vrot.lane.b32.xlu0 %v299, 64
    %v333 = vpop.permute.xlu0 %332
    %334 = vrot.lane.b32.xlu0 %v300, 64
    %v335 = vpop.permute.xlu0 %334
    %336 = vrot.lane.b32.xlu0 %v301, 64
    %v337 = vpop.permute.xlu0 %336
    %338 = vrot.lane.b32.xlu0 %v302, 64
    %v339 = vpop.permute.xlu0 %338
    %340 = vrot.lane.b32.xlu0 %v303, 64
    %v341 = vpop.permute.xlu0 %340
    %342 = vrot.lane.b32.xlu0 %v304, 64
    %v343 = vpop.permute.xlu0 %342
    %344 = vrot.lane.b32.xlu0 %v305, 64
    %v345 = vpop.permute.xlu0 %344
    %346 = vrot.lane.b32.xlu0 %v306, 64
    %v347 = vpop.permute.xlu0 %346
    %348 = vrot.lane.b32.xlu0 %v307, 64
    %v349 = vpop.permute.xlu0 %348
    %350 = vrot.lane.b32.xlu0 %v308, 64
    %v351 = vpop.permute.xlu0 %350
    %352 = vrot.lane.b32.xlu0 %v309, 64
    %v353 = vpop.permute.xlu0 %352
    %354 = vrot.lane.b32.xlu0 %v310, 64
    %v355 = vpop.permute.xlu0 %354
    %356 = vrot.lane.b32.xlu0 %v311, 64
    %v357 = vpop.permute.xlu0 %356
    %358 = vrot.lane.b32.xlu0 %v312, 64
    %v359 = vpop.permute.xlu0 %358
    %360 = vrot.lane.b32.xlu0 %v313, 64
    %v361 = vpop.permute.xlu0 %360
    %362 = vrot.lane.b32.xlu0 %v314, 64
    %v363 = vpop.permute.xlu0 %362
    %364 = vrot.lane.b32.xlu0 %v315, 64
    %v365 = vpop.permute.xlu0 %364
    %366 = vrot.lane.b32.xlu0 %v316, 64
    %v367 = vpop.permute.xlu0 %366
    %368 = vrot.lane.b32.xlu0 %v317, 64
    %v369 = vpop.permute.xlu0 %368
    %370 = vrot.lane.b32.xlu0 %v318, 64
    %v371 = vpop.permute.xlu0 %370
    %372 = vrot.lane.b32.xlu0 %v319, 64
    %v373 = vpop.permute.xlu0 %372
    %374 = vrot.lane.b32.xlu0 %v320, 64
    %v375 = vpop.permute.xlu0 %374
    %376 = vrot.lane.b32.xlu0 %v321, 64
    %v377 = vpop.permute.xlu0 %376
    %378 = vrot.lane.b32.xlu0 %v322, 64
    %v379 = vpop.permute.xlu0 %378
    %380 = vrot.lane.b32.xlu0 %v323, 64
    %v381 = vpop.permute.xlu0 %380
    %382 = vrot.lane.b32.xlu0 %v324, 64
    %v383 = vpop.permute.xlu0 %382
    %384 = vrot.lane.b32.xlu0 %v325, 64
    %v385 = vpop.permute.xlu0 %384
    %386 = vrot.lane.b32.xlu0 %v326, 64
    %v387 = vpop.permute.xlu0 %386
    %388 = vrot.lane.b32.xlu0 %v327, 64
    %v389 = vpop.permute.xlu0 %388
    %390 = vrot.lane.b32.xlu0 %v328, 64
    %v391 = vpop.permute.xlu0 %390
    %392 = vrot.lane.b32.xlu0 %v329, 64
    %v393 = vpop.permute.xlu0 %392
    %426 = vmatprep.subr.bf16.mxu0 0
    %427 = vmatpush1.bf16.msra.mxu0 %v331
    %428 = vmatprep.subr.bf16.mxu0 0
    %429 = vmatpush1.bf16.msra.mxu0 %v333
    %430 = vmatprep.subr.bf16.mxu0 0
    %431 = vmatpush1.bf16.msra.mxu0 %v335
    %432 = vmatprep.subr.bf16.mxu0 0
    %433 = vmatpush1.bf16.msra.mxu0 %v337
    %434 = vmatprep.subr.bf16.mxu0 0
    %435 = vmatpush1.bf16.msra.mxu0 %v339
    %436 = vmatprep.subr.bf16.mxu0 0
    %437 = vmatpush1.bf16.msra.mxu0 %v341
    %438 = vmatprep.subr.bf16.mxu0 0
    %439 = vmatpush1.bf16.msra.mxu0 %v343
    %440 = vmatprep.subr.bf16.mxu0 0
    %441 = vmatpush1.bf16.msra.mxu0 %v345
    %442 = vmatprep.subr.bf16.mxu0 0
    %443 = vmatpush1.bf16.msra.mxu0 %v347
    %444 = vmatprep.subr.bf16.mxu0 0
    %445 = vmatpush1.bf16.msra.mxu0 %v349
    %446 = vmatprep.subr.bf16.mxu0 0
    %447 = vmatpush1.bf16.msra.mxu0 %v351
    %448 = vmatprep.subr.bf16.mxu0 0
    %449 = vmatpush1.bf16.msra.mxu0 %v353
    %450 = vmatprep.subr.bf16.mxu0 0
    %451 = vmatpush1.bf16.msra.mxu0 %v355
    %452 = vmatprep.subr.bf16.mxu0 0
    %453 = vmatpush1.bf16.msra.mxu0 %v357
    %454 = vmatprep.subr.bf16.mxu0 0
    %455 = vmatpush1.bf16.msra.mxu0 %v359
    %456 = vmatprep.subr.bf16.mxu0 0
    %457 = vmatpush1.bf16.msra.mxu0 %v361
    %458 = vmatprep.mubr.bf16.mxu0 %v163
    %459 = vmatmul.mubr.bf16.gmra.mrb[0].mxu0 %v162
    %v460 = vpop.f32.mrb[0].mxu0
    %v461 = vadd.f32 0.0, %v460
    %v462 = vpop.f32.mrb[0].mxu0
    %v463 = vpop.f32.mrb[0].mxu0
    %v464 = vpop.f32.mrb[0].mxu0
    %465 = vdwg.mxu0
    %466 = vmatprep.subr.bf16.mxu0 0
    %467 = vmatpush1.bf16.msra.mxu0 %v363
    %468 = vmatprep.subr.bf16.mxu0 0
    %469 = vmatpush1.bf16.msra.mxu0 %v365
    %470 = vmatprep.subr.bf16.mxu0 0
    %471 = vmatpush1.bf16.msra.mxu0 %v367
    %472 = vmatprep.subr.bf16.mxu0 0
    %473 = vmatpush1.bf16.msra.mxu0 %v369
    %474 = vmatprep.subr.bf16.mxu0 0
    %475 = vmatpush1.bf16.msra.mxu0 %v371
    %476 = vmatprep.subr.bf16.mxu0 0
    %477 = vmatpush1.bf16.msra.mxu0 %v373
    %478 = vmatprep.subr.bf16.mxu0 0
    %479 = vmatpush1.bf16.msra.mxu0 %v375
    %480 = vmatprep.subr.bf16.mxu0 0
    %481 = vmatpush1.bf16.msra.mxu0 %v377
    %482 = vmatprep.subr.bf16.mxu0 0
    %483 = vmatpush1.bf16.msra.mxu0 %v379
    %484 = vmatprep.subr.bf16.mxu0 0
    %485 = vmatpush1.bf16.msra.mxu0 %v381
    %486 = vmatprep.subr.bf16.mxu0 0
    %487 = vmatpush1.bf16.msra.mxu0 %v383
    %488 = vmatprep.subr.bf16.mxu0 0
    %489 = vmatpush1.bf16.msra.mxu0 %v385
    %490 = vmatprep.subr.bf16.mxu0 0
    %491 = vmatpush1.bf16.msra.mxu0 %v387
    %492 = vmatprep.subr.bf16.mxu0 0
    %493 = vmatpush1.bf16.msra.mxu0 %v389
    %494 = vmatprep.subr.bf16.mxu0 0
    %495 = vmatpush1.bf16.msra.mxu0 %v391
    %496 = vmatprep.subr.bf16.mxu0 0
    %497 = vmatpush1.bf16.msra.mxu0 %v393
    %498 = vmatprep.mubr.bf16.mxu0 %v165
    %499 = vmatmul.mubr.bf16.gmra.mrb[0].mxu0 %v164
    %v500 = vpop.f32.mrb[0].mxu0
    %v501 = vadd.f32 %v461, %v500
    %v502 = vpop.f32.mrb[0].mxu0
    %v503 = vpop.f32.mrb[0].mxu0
    %v504 = vpop.f32.mrb[0].mxu0
    %505 = vdwg.mxu0
    %v506 = vrot.slane %v149, 7
    %v507 = vsel %vm154, %v506, %v145
    %v508 = vrot.slane %v150, 7
    %v509 = vsel %vm154, %v508, %v146
    %v510 = vrot.slane %v151, 7
    %v511 = vsel %vm154, %v510, %v147
    %v512 = vrot.slane %v152, 7
    %v513 = vsel %vm154, %v512, %v148
    %v514 = vpack.c.b16 %v507, %v507
    %v515 = vpack.c.b16 %v509, %v509
    %v516 = vpack.c.b16 %v511, %v511
    %v517 = vpack.c.b16 %v513, %v513
    %554 = vmatprep.subr.bf16.mxu0 0
    %555 = vmatpush1.bf16.msra.mxu0 %v298
    %556 = vmatprep.subr.bf16.mxu0 0
    %557 = vmatpush1.bf16.msra.mxu0 %v299
    %558 = vmatprep.subr.bf16.mxu0 0
    %559 = vmatpush1.bf16.msra.mxu0 %v300
    %560 = vmatprep.subr.bf16.mxu0 0
    %561 = vmatpush1.bf16.msra.mxu0 %v301
    %562 = vmatprep.subr.bf16.mxu0 0
    %563 = vmatpush1.bf16.msra.mxu0 %v302
    %564 = vmatprep.subr.bf16.mxu0 0
    %565 = vmatpush1.bf16.msra.mxu0 %v303
    %566 = vmatprep.subr.bf16.mxu0 0
    %567 = vmatpush1.bf16.msra.mxu0 %v304
    %568 = vmatprep.subr.bf16.mxu0 0
    %569 = vmatpush1.bf16.msra.mxu0 %v305
    %570 = vmatprep.subr.bf16.mxu0 0
    %571 = vmatpush1.bf16.msra.mxu0 %v306
    %572 = vmatprep.subr.bf16.mxu0 0
    %573 = vmatpush1.bf16.msra.mxu0 %v307
    %574 = vmatprep.subr.bf16.mxu0 0
    %575 = vmatpush1.bf16.msra.mxu0 %v308
    %576 = vmatprep.subr.bf16.mxu0 0
    %577 = vmatpush1.bf16.msra.mxu0 %v309
    %578 = vmatprep.subr.bf16.mxu0 0
    %579 = vmatpush1.bf16.msra.mxu0 %v310
    %580 = vmatprep.subr.bf16.mxu0 0
    %581 = vmatpush1.bf16.msra.mxu0 %v311
    %582 = vmatprep.subr.bf16.mxu0 0
    %583 = vmatpush1.bf16.msra.mxu0 %v312
    %584 = vmatprep.subr.bf16.mxu0 0
    %585 = vmatpush1.bf16.msra.mxu0 %v313
    %586 = vmatprep.mubr.bf16.mxu0 %v515
    %587 = vmatmul.mubr.bf16.gmra.mrb[0].mxu0 %v514
    %v588 = vpop.f32.mrb[0].mxu0
    %v589 = vadd.f32 %v501, %v588
    %v590 = vpop.f32.mrb[0].mxu0
    %v591 = vpop.f32.mrb[0].mxu0
    %v592 = vpop.f32.mrb[0].mxu0
    %593 = vdwg.mxu0
    %594 = vmatprep.subr.bf16.mxu0 0
    %595 = vmatpush1.bf16.msra.mxu0 %v314
    %596 = vmatprep.subr.bf16.mxu0 0
    %597 = vmatpush1.bf16.msra.mxu0 %v315
    %598 = vmatprep.subr.bf16.mxu0 0
    %599 = vmatpush1.bf16.msra.mxu0 %v316
    %600 = vmatprep.subr.bf16.mxu0 0
    %601 = vmatpush1.bf16.msra.mxu0 %v317
    %602 = vmatprep.subr.bf16.mxu0 0
    %603 = vmatpush1.bf16.msra.mxu0 %v318
    %604 = vmatprep.subr.bf16.mxu0 0
    %605 = vmatpush1.bf16.msra.mxu0 %v319
    %606 = vmatprep.subr.bf16.mxu0 0
    %607 = vmatpush1.bf16.msra.mxu0 %v320
    %608 = vmatprep.subr.bf16.mxu0 0
    %609 = vmatpush1.bf16.msra.mxu0 %v321
    %610 = vmatprep.subr.bf16.mxu0 0
    %611 = vmatpush1.bf16.msra.mxu0 %v322
    %612 = vmatprep.subr.bf16.mxu0 0
    %613 = vmatpush1.bf16.msra.mxu0 %v323
    %614 = vmatprep.subr.bf16.mxu0 0
    %615 = vmatpush1.bf16.msra.mxu0 %v324
    %616 = vmatprep.subr.bf16.mxu0 0
    %617 = vmatpush1.bf16.msra.mxu0 %v325
    %618 = vmatprep.subr.bf16.mxu0 0
    %619 = vmatpush1.bf16.msra.mxu0 %v326
    %620 = vmatprep.subr.bf16.mxu0 0
    %621 = vmatpush1.bf16.msra.mxu0 %v327
    %622 = vmatprep.subr.bf16.mxu0 0
    %623 = vmatpush1.bf16.msra.mxu0 %v328
    %624 = vmatprep.subr.bf16.mxu0 0
    %625 = vmatpush1.bf16.msra.mxu0 %v329
    %626 = vmatprep.mubr.bf16.mxu0 %v517
    %627 = vmatmul.mubr.bf16.gmra.mrb[0].mxu0 %v516
    %v628 = vpop.f32.mrb[0].mxu0
    %v629 = vadd.f32 %v589, %v628
    %v630 = vpop.f32.mrb[0].mxu0
    %v631 = vpop.f32.mrb[0].mxu0
    %v632 = vpop.f32.mrb[0].mxu0
    %633 = vdwg.mxu0
    %v634 = vadd.f32 %v28, %v629
    %vm635 = vcmask 517120
    %636 = vst.msk [vmem:[#allocation2] sm:$0x3] %vm635, %v634
    // Predicated region
    $region26: #{liver_cnn_forward.5} parent=1 // pred_check
      %p637 = pneg %p22
    $region27: #{liver_cnn_forward.5} parent=1 // pred_check_branch
      %639 = sbr.rel (%p637) target = $region29
    $region28: #{liver_cnn_forward.5} parent=1 // pred_region
      %v640 = vld [vmem:[#allocation2] sm:$0x3]
      %v641 = vld [vmem:[%s2] sm:$0x1]
      %v643 = vlaneseq
      %v644 = vshrl.u32 %v643, 7
      %v645 = vsub.s32 0, %v644
      %v646 = vrot.slane %v641, %v645
      %v648 = vadd.f32 %v640, %v646
      %v649 = vmax.f32 %v648, 0.0
      %v650 = vpack.c.bf16 %v649, %v649
      %v651 = vld [vmem:[%s3] sm:$0xf]
      %v652 = vld [vmem:[%s3 + $0x4] sm:$0xf]
      %v653 = vld [vmem:[%s3 + $0x8] sm:$0xf]
      %v654 = vld [vmem:[%s3 + $0xc] sm:$0xf]
      %v655 = vld [vmem:[%s3 + $0x10] sm:$0xf]
      %v656 = vld [vmem:[%s3 + $0x14] sm:$0xf]
      %v657 = vld [vmem:[%s3 + $0x18] sm:$0xf]
      %v658 = vld [vmem:[%s3 + $0x1c] sm:$0xf]
      %v659 = vld [vmem:[%s4] sm:$0x1]
      %v661 = vlaneseq
      %v662 = vshrl.u32 %v661, 7
      %v663 = vsub.s32 0, %v662
      %v664 = vrot.slane %v659, %v663
      %v674 = vunpack.c.l.b16 %v651
      %v675 = vunpack.c.l.b16 %v652
      %v676 = vunpack.c.l.b16 %v653
      %v677 = vunpack.c.l.b16 %v654
      %v678 = vunpack.c.l.b16 %v655
      %v679 = vunpack.c.l.b16 %v656
      %v680 = vunpack.c.l.b16 %v657
      %v681 = vunpack.c.l.b16 %v658
      %v682 = vpack.c.b16 %v675, %v674
      %v683 = vpack.c.b16 %v677, %v676
      %v684 = vpack.c.b16 %v679, %v678
      %v685 = vpack.c.b16 %v681, %v680
      %vm690 = vcmask 523264
      %v692 = vsel %vm690, %v650, 0
      %694 = vmatprep.subr.bf16.mxu0 0
      %695 = vmatpush1.bf16.msra.mxu0 %v682
      %696 = vmatprep.subr.bf16.mxu0 0
      %697 = vmatpush1.bf16.msra.mxu0 %v683
      %698 = vmatprep.subr.bf16.mxu0 0
      %699 = vmatpush1.bf16.msra.mxu0 %v684
      %700 = vmatprep.subr.bf16.mxu0 0
      %701 = vmatpush1.bf16.msra.mxu0 %v685
      %702 = vmatprep.subr.bf16.mxu0 0
      %703 = vmatpush1.bf16.msra.mxu0 0
      %704 = vmatprep.subr.bf16.mxu0 0
      %705 = vmatpush1.bf16.msra.mxu0 0
      %706 = vmatprep.subr.bf16.mxu0 0
      %707 = vmatpush1.bf16.msra.mxu0 0
      %708 = vmatprep.subr.bf16.mxu0 0
      %709 = vmatpush1.bf16.msra.mxu0 0
      %710 = vmatprep.subr.bf16.mxu0 0
      %711 = vmatpush1.bf16.msra.mxu0 0
      %712 = vmatprep.subr.bf16.mxu0 0
      %713 = vmatpush1.bf16.msra.mxu0 0
      %714 = vmatprep.subr.bf16.mxu0 0
      %715 = vmatpush1.bf16.msra.mxu0 0
      %716 = vmatprep.subr.bf16.mxu0 0
      %717 = vmatpush1.bf16.msra.mxu0 0
      %718 = vmatprep.subr.bf16.mxu0 0
      %719 = vmatpush1.bf16.msra.mxu0 0
      %720 = vmatprep.subr.bf16.mxu0 0
      %721 = vmatpush1.bf16.msra.mxu0 0
      %722 = vmatprep.subr.bf16.mxu0 0
      %723 = vmatpush1.bf16.msra.mxu0 0
      %724 = vmatprep.subr.bf16.mxu0 0
      %725 = vmatpush1.bf16.msra.mxu0 0
      %726 = vmatprep.mubr.bf16.mxu0 0
      %727 = vmatmul.mubr.bf16.gmra.mrb[0].mxu0 %v692
      %v728 = vpop.f32.mrb[0].mxu0
      %v729 = vadd.f32 %v664, %v728
      %v730 = vpop.f32.mrb[0].mxu0
      %v731 = vpop.f32.mrb[0].mxu0
      %v732 = vpop.f32.mrb[0].mxu0
      %733 = vdwg.mxu0
      %734 = vst [vmem:[#allocation3] sm:$0x3] %v729
    $region29: #{liver_cnn_forward.5} parent=1 // pred_fallthru
      _
    // Predicated region
    $region30: #{liver_cnn_forward.5} parent=1 // pred_check
      _
    $region31: #{liver_cnn_forward.5} parent=1 // pred_check_branch
      %736 = sbr.rel (0) target = $region33
    $region32: #{liver_cnn_forward.5} parent=1 // pred_region
      %s738 = ssub.s32 32, 32
      %739 = vsyncadd [#allocation4], %s738
      %s741 = sshll.u32 [#allocation3], 4
      %s742 = int_to_ptr.vmem [resolvable:$true] %s741
      %744 = dma.vmem_to_hbm [thread:$0]  %s742, 32, %s5, [#allocation4]
    $region33: #{liver_cnn_forward.5} parent=1 // pred_fallthru
      _
    // Predicated region
    $region34: #{liver_cnn_forward.5} parent=1 // pred_check
      _
    $region35: #{liver_cnn_forward.5} parent=1 // pred_check_branch
      %746 = sbr.rel (0) target = $region37
    $region36: #{liver_cnn_forward.5} parent=1 // pred_region
      %747 = dma.done [#allocation4], 32
    $region37: #{liver_cnn_forward.5} parent=1 // pred_fallthru
      _
    %748 = vsyncpa [#allocation4], 1

</llo_original>
